<compile_context>
chip_gen: v5e
topology: v5e:2x2
jax: 0.10.0
libtpu: 0.0.40
codegen_flags: <defaults>
</compile_context>

<pallas_src>
import functools

import jax
import jax.numpy as jnp
import numpy as np
from jax import lax
from jax.experimental import pallas as pl
from jax.experimental.pallas import tpu as pltpu

EPS = 1e-5          # BatchNorm2d default eps
_EMB_BASE = 128     # lane-aligned zero prefix in the emb scratch (left halo for conv2 windows)


def _round_up(v, m):
    return ((v + m - 1) // m) * m


# ---------------------- Pallas kernel 1: batch statistics ---------------------- #

def _stats_kernel(x_ref, sum_ref, sq_ref):
    """Accumulate per-row (row = one (n, c) pair) sum and sum-of-squares over spatial chunks.

    x_ref  : [RB, chunk]
    sum_ref: [RB, 1]   accumulator, resident across the chunk grid axis
    sq_ref : [RB, 1]
    """
    @pl.when(pl.program_id(1) == 0)
    def _():
        sum_ref[...] = jnp.zeros_like(sum_ref)
        sq_ref[...] = jnp.zeros_like(sq_ref)

    x = x_ref[...].astype(jnp.float32)
    sum_ref[...] += jnp.sum(x, axis=1, keepdims=True)
    sq_ref[...] += jnp.sum(x * x, axis=1, keepdims=True)


def batch_stats(x_rows):
    """x_rows: [N*C, H*W] float32 -> (sum, sumsq), each [N*C, 1] float32."""
    NR, HW = x_rows.shape

    # Spatial chunking: full row if small, else the largest multiple-of-128 divisor <= 2048.
    if HW <= 2048:
        chunk = HW
    else:
        chunk = HW  # TODO(synk): add a masked tail path for HW with no multiple-of-128 divisor.
        for c in range(2048, 127, -128):
            if HW % c == 0:
                chunk = c
                break
    n_chunks = HW // chunk

    # Row blocking: prefer >=2 row blocks (megacore on the "parallel" axis), rows on sublanes.
    RB = NR
    if NR % 8 == 0:
        for cand in (256, 128, 64, 32, 16, 8):
            if cand < NR and NR % cand == 0:
                RB = cand
                break
    n_rb = NR // RB

    return pl.pallas_call(
        _stats_kernel,
        out_shape=(jax.ShapeDtypeStruct((NR, 1), jnp.float32),
                   jax.ShapeDtypeStruct((NR, 1), jnp.float32)),
        grid_spec=pltpu.PrefetchScalarGridSpec(
            num_scalar_prefetch=0,
            grid=(n_rb, n_chunks),
            in_specs=[pl.BlockSpec((RB, chunk), lambda i, j: (i, j))],
            out_specs=[pl.BlockSpec((RB, 1), lambda i, j: (i, 0)),
                       pl.BlockSpec((RB, 1), lambda i, j: (i, 0))],
        ),
        compiler_params=pltpu.CompilerParams(
            dimension_semantics=("parallel", "arbitrary")),
    )(x_rows)


# ------------------- Pallas kernel 2: fully fused SPADE body ------------------- #

def _spade_fused_kernel(m_ref, x_ref, valid_ref, w1_ref, b1_ref, w2_ref, b2_ref,
                        mean_ref, inv_ref, o_ref, emb_ref, patch_ref, *, Wp, Rs, C, c_pad):
    """One (batch element, row slab). Channels on sublanes, flattened slab-spatial on lanes.

    Row coordinates:
      output frame : Rs rows, global rows [s*Rs, s*Rs + Rs)
      emb frame    : Rs+2 rows (1-row halo each side)
      mask slab    : Rs+4 rows (2-row halo each side), flattened, with ONE extra zero lane on
                     each end so every 3x3 tap is an in-bounds shifted window.

    m_ref    : [cm_pad, (Rs+4)*Wp + 2]   bf16 mask slab (zero outside the valid image region)
    x_ref    : [C, Rs*Wp]                f32 input slab
    valid_ref: [1, (Rs+2)*Wp]            f32 0/1 mask of emb-frame positions inside the real image
    w1_ref   : [hid_pad, 9*cm_pad]       bf16 conv_share weights, tap-major im2col layout
    b1_ref   : [hid_pad, 1]              f32
    w2_ref   : [2*c_pad, 9*hid_pad]      bf16 conv_gamma (rows [0,c_pad)) | conv_beta (rows [c_pad,2c_pad))
    b2_ref   : [2*c_pad, 1]              f32
    mean_ref : [C, 1]                    batch mean
    inv_ref  : [C, 1]                    1/sqrt(var + eps)
    o_ref    : [C, Rs*Wp]                f32 output slab
    emb_ref  : VMEM scratch [hid_pad, _EMB_BASE + roundup(Lemb+1, 128)]  bf16
    patch_ref: VMEM scratch [9*cm_pad, Lemb]                             bf16
    """
    Lout = Rs * Wp
    Lemb = (Rs + 2) * Wp
    cm_pad = m_ref.shape[0]
    hid_pad = emb_ref.shape[0]
    ext_len = emb_ref.shape[1]
    offs = [dy * Wp + dx for dy in range(3) for dx in range(3)]   # tap-major (dy, dx)

    # ---- conv_share: small im2col (K = 9*cm_pad) -> ONE MXU matmul, f32 accumulation ----
    msk = m_ref[...]                                              # [cm_pad, Lmask+2] bf16
    for t, a in enumerate(offs):
        patch_ref[t * cm_pad:(t + 1) * cm_pad, :] = msk[:, a:a + Lemb]
    emb = jnp.dot(w1_ref[...], patch_ref[...], preferred_element_type=jnp.float32)
    # bias + zero everything outside the real image (this IS conv2's zero-padding semantics)
    emb = (emb + b1_ref[...]) * valid_ref[...]

    # Stash masked emb (bf16) at a lane-aligned offset; zero only the tiny halo prefix/suffix.
    emb_ref[:, :_EMB_BASE] = jnp.zeros((hid_pad, _EMB_BASE), jnp.bfloat16)
    emb_ref[:, _EMB_BASE + Lemb:] = jnp.zeros((hid_pad, ext_len - _EMB_BASE - Lemb), jnp.bfloat16)
    emb_ref[:, _EMB_BASE:_EMB_BASE + Lemb] = emb.astype(jnp.bfloat16)

    # ---- conv_gamma | conv_beta fused along Cout: 9 accumulated K=hid_pad matmuls over
    #      shifted windows of the emb scratch (no im2col materialization). ----
    acc = jnp.zeros((2 * c_pad, Lout), jnp.float32)
    for t, a in enumerate(offs):
        st = _EMB_BASE + a - 1
        acc += jnp.dot(w2_ref[:, t * hid_pad:(t + 1) * hid_pad],
                       emb_ref[:, st:st + Lout],
                       preferred_element_type=jnp.float32)
    gb = acc + b2_ref[...]
    gamma = gb[:C, :]                     # sublane-tile-aligned slice starts (0 and c_pad)
    beta = gb[c_pad:c_pad + C, :]

    # ---- BN apply + SPADE modulation (f32) ----
    xn = (x_ref[...] - mean_ref[...]) * inv_ref[...]
    o_ref[...] = ((1.0 + gamma) * xn + beta).astype(o_ref.dtype)


def spade_modulate(m_slabs, x_slabs, valid, w1, b1, w2, b2, mean, inv, *, Rs, Wp, C, c_pad):
    N, n_slabs, _, Lout = x_slabs.shape
    cm_pad, lmask2 = m_slabs.shape[2], m_slabs.shape[3]
    hid_pad = w1.shape[0]
    Lemb = (Rs + 2) * Wp
    ext_len = _EMB_BASE + _round_up(Lemb + 1, 128)

    kernel = functools.partial(_spade_fused_kernel, Wp=Wp, Rs=Rs, C=C, c_pad=c_pad)
    per_ns = lambda n, s: (n, s, 0, 0)
    per_s = lambda n, s: (s, 0, 0)
    fixed = lambda n, s: (0, 0)

    return pl.pallas_call(
        kernel,
        out_shape=jax.ShapeDtypeStruct((N, n_slabs, C, Lout), jnp.float32),
        grid_spec=pltpu.PrefetchScalarGridSpec(
            num_scalar_prefetch=0,
            grid=(N, n_slabs),
            in_specs=[
                pl.BlockSpec((None, None, cm_pad, lmask2), per_ns),   # mask slab (with halo)
                pl.BlockSpec((None, None, C, Lout), per_ns),          # x slab
                pl.BlockSpec((None, 1, Lemb), per_s),                 # per-slab emb validity mask
                pl.BlockSpec((hid_pad, 9 * cm_pad), fixed),           # conv_share weights (resident)
                pl.BlockSpec((hid_pad, 1), fixed),
                pl.BlockSpec((2 * c_pad, 9 * hid_pad), fixed),        # conv_gamma|beta weights
                pl.BlockSpec((2 * c_pad, 1), fixed),
                pl.BlockSpec((C, 1), fixed),                          # batch mean
                pl.BlockSpec((C, 1), fixed),                          # rsqrt(var + eps)
            ],
            out_specs=pl.BlockSpec((None, None, C, Lout), per_ns),
            scratch_shapes=[
                pltpu.VMEM((hid_pad, ext_len), jnp.bfloat16),         # emb + zero halo lanes
                pltpu.VMEM((9 * cm_pad, Lemb), jnp.bfloat16),         # conv_share im2col patches
            ],
        ),
        compiler_params=pltpu.CompilerParams(
            dimension_semantics=("parallel", "parallel"),   # batch x slabs both megacore-splittable
            vmem_limit_bytes=48 * 1024 * 1024,              # slab sizes are budgeted well below this
        ),
    )(m_slabs, x_slabs, valid, w1, b1, w2, b2, mean, inv)


# --------------------------------- JAX glue ------------------------------------ #

def nearest_resize_nchw(m, out_hw):
    """PyTorch F.interpolate(mode='nearest'): src = floor(dst * in/out)."""
    _, _, Hm, Wm = m.shape
    Ho, Wo = out_hw
    hi = (jnp.arange(Ho) * Hm) // Ho
    wi = (jnp.arange(Wo) * Wm) // Wo
    return m[:, :, hi][:, :, :, wi]


def _im2col_weights(w_hwio, cin_pad, cout_pad):
    """[3,3,Cin,Cout] (HWIO) -> [cout_pad, 9*cin_pad], tap-major (dy, dx, cin); zero padding."""
    kh, kw, cin, cout = w_hwio.shape
    w = jnp.pad(w_hwio, ((0, 0), (0, 0), (0, cin_pad - cin), (0, cout_pad - cout)))
    return jnp.transpose(w, (3, 0, 1, 2)).reshape(cout_pad, kh * kw * cin_pad)


def spade_forward(params, x_nchw, mask_nchw, rows_per_slab=None):
    N, C, H, W = x_nchw.shape
    Cm = mask_nchw.shape[1]
    hidden = params["w_share"].shape[-1]

    cm_pad = _round_up(Cm, 8)       # single im2col matmul path for conv_share
    hid_pad = _round_up(hidden, 8)
    c_pad = _round_up(C, 8)         # tile-aligned gamma/beta split

    Wp = W + 2                      # 2 zero columns: right-pad of row i == left-pad of row i+1
    if rows_per_slab is None:
        rows_per_slab = max(1, min(H, max(8, 4096 // Wp)))   # ~4K lanes per slab
    Rs = max(1, min(rows_per_slab, H))
    n_slabs = -(-H // Rs)
    H_pad = n_slabs * Rs
    Lout, Lemb, Lmask = Rs * Wp, (Rs + 2) * Wp, (Rs + 4) * Wp

    # ---- pass 1: batch statistics (rows-on-sublanes tiled Pallas reduction) ----
    sums, sq = batch_stats(x_nchw.reshape(N * C, H * W))        # each [N*C, 1]
    cnt = float(N * H * W)
    sums = sums.reshape(N, C).sum(0)
    sq = sq.reshape(N, C).sum(0)
    mean = (sums / cnt).reshape(C, 1)
    var = (sq / cnt).reshape(C, 1) - mean * mean                # biased var, as in BN training fwd
    # TODO(synk): switch to a shifted/Welford accumulation if activations can have |mean| >> std.
    inv = lax.rsqrt(var + EPS)

    # ---- x slabs: [N, n_slabs, C, Rs*Wp] f32 (pad+transpose fuses into one XLA copy) ----
    x_p = jnp.pad(x_nchw, ((0, 0), (0, 0), (0, H_pad - H), (0, 2)))
    x_slabs = (x_p.reshape(N, C, n_slabs, Rs, Wp)
               .transpose(0, 2, 1, 3, 4)
               .reshape(N, n_slabs, C, Lout))
    # TODO(synk): for W+2 a multiple of 128, store the unpadded NCHW output directly from the kernel
    # and feed x unpadded to drop these glue-side copies entirely.

    # ---- mask slabs with 2-row halo, bf16: [N, n_slabs, cm_pad, Lmask+2] ----
    m = nearest_resize_nchw(mask_nchw, (H, W))
    m_p = jnp.pad(m, ((0, 0), (0, cm_pad - Cm), (2, H_pad - H + 2), (0, 2)))   # [N,cm_pad,H_pad+4,Wp]
    m_flat = m_p.reshape(N, cm_pad, (H_pad + 4) * Wp)
    m_ext = jnp.pad(m_flat, ((0, 0), (0, 0), (1, 1))).astype(jnp.bfloat16)     # 1 zero lane each end
    m_slabs = jnp.stack(
        [m_ext[:, :, s * Rs * Wp: s * Rs * Wp + Lmask + 2] for s in range(n_slabs)], axis=1)

    # ---- per-slab validity of the emb frame (rows [s*Rs-1, s*Rs+Rs+1), cols < W), static ----
    rows = np.arange(-1, Rs + 1)[None, :] + (np.arange(n_slabs) * Rs)[:, None]
    row_ok = (rows >= 0) & (rows < H)
    col_ok = np.arange(Wp) < W
    valid = jnp.asarray(
        (row_ok[:, :, None] & col_ok[None, None, :]).astype(np.float32).reshape(n_slabs, 1, Lemb))

    # ---- weights: bf16 im2col layout; gamma & beta fused along (tile-aligned) Cout ----
    w1 = _im2col_weights(params["w_share"], cm_pad, hid_pad).astype(jnp.bfloat16)
    b1 = jnp.pad(params["b_share"], (0, hid_pad - hidden)).reshape(hid_pad, 1)
    w2 = jnp.concatenate([_im2col_weights(params["w_gamma"], hid_pad, c_pad),
                          _im2col_weights(params["w_beta"], hid_pad, c_pad)],
                         axis=0).astype(jnp.bfloat16)
    b2 = jnp.concatenate([jnp.pad(params["b_gamma"], (0, c_pad - C)),
                          jnp.pad(params["b_beta"], (0, c_pad - C))]).reshape(2 * c_pad, 1)

    # ---- pass 2: fused conv_share -> conv_gamma/beta -> BN apply -> modulation ----
    out_slabs = spade_modulate(m_slabs, x_slabs, valid, w1, b1, w2, b2, mean, inv,
                               Rs=Rs, Wp=Wp, C=C, c_pad=c_pad)
    out = (out_slabs.reshape(N, n_slabs, C, Rs, Wp)
           .transpose(0, 2, 1, 3, 4)
           .reshape(N, C, H_pad, Wp))
    return out[:, :, :H, :W]


# ----------------------------- pure-JAX reference ------------------------------- #

def spade_reference(params, x, mask):
    m = nearest_resize_nchw(mask, x.shape[2:])

    def conv(inp, w, b):
        return lax.conv_general_dilated(
            inp, w, (1, 1), ((1, 1), (1, 1)),
            dimension_numbers=("NCHW", "HWIO", "NCHW"),
            precision=lax.Precision.HIGHEST) + b.reshape(1, -1, 1, 1)

    emb = conv(m, params["w_share"], params["b_share"])
    gamma = conv(emb, params["w_gamma"], params["b_gamma"])
    beta = conv(emb, params["w_beta"], params["b_beta"])
    mean = jnp.mean(x, axis=(0, 2, 3), keepdims=True)
    var = jnp.mean(jnp.square(x - mean), axis=(0, 2, 3), keepdims=True)
    xn = (x - mean) * lax.rsqrt(var + EPS)
    return (1.0 + gamma) * xn + beta


# ----------------------------------- params ------------------------------------- #

def init_params(key, norm_ch, mask_ch, hidden_ch):
    ks = jax.random.split(key, 6)

    def conv_init(kw, kb, cin, cout):
        # nn.Conv2d default: U(-1/sqrt(fan_in), 1/sqrt(fan_in)), fan_in = cin*3*3
        bound = 1.0 / np.sqrt(cin * 9)
        w = jax.random.uniform(kw, (3, 3, cin, cout), jnp.float32, -bound, bound)
        b = jax.random.uniform(kb, (cout,), jnp.float32, -bound, bound)
        return w, b

    w_share, b_share = conv_init(ks[0], ks[1], mask_ch, hidden_ch)
    w_gamma, b_gamma = conv_init(ks[2], ks[3], hidden_ch, norm_ch)
    w_beta, b_beta = conv_init(ks[4], ks[5], hidden_ch, norm_ch)
    return dict(w_share=w_share, b_share=b_share,
                w_gamma=w_gamma, b_gamma=b_gamma,
                w_beta=w_beta, b_beta=b_beta)


# ------------------------------------ main --------------------------------------- #

if __name__ == "__main__":
    N, norm_ch, H, W = 2, 4, 16, 16      # x:    [N, norm_ch, H, W]
    mask_ch, Hm, Wm = 3, 8, 8            # mask: [N, mask_ch, Hm, Wm]  (nearest-upsampled)
    hidden_ch = 32

    key = jax.random.PRNGKey(0)
    kx, km, kp = jax.random.split(key, 3)
    x = jax.random.normal(kx, (N, norm_ch, H, W), jnp.float32)
    mask = jax.random.normal(km, (N, mask_ch, Hm, Wm), jnp.float32)
    params = init_params(kp, norm_ch, mask_ch, hidden_ch)

    # rows_per_slab=8 -> 2 spatial slabs, so the halo path is exercised even at this small size.
    fwd = jax.jit(functools.partial(spade_forward, rows_per_slab=8))
    out = jax.block_until_ready(fwd(params, x, mask))
    ref = jax.block_until_ready(spade_reference(params, x, mask))

    # bf16 MXU conv chain vs f32 HIGHEST reference -> bf16-class tolerance.
    if not bool(jnp.allclose(out, ref, atol=5e-2, rtol=5e-2)):
        raise AssertionError(
            f"mismatch vs reference, max err = {float(jnp.max(jnp.abs(out - ref)))}")

    print("KERNEL_OK")
</pallas_src>

<mosaic_0001>
module attributes {stable_mosaic.version = 11 : i64} {
  func.func @_stats_kernel(%arg0: i32, %arg1: i32, %arg2: memref<8x256xf32, #tpu.memory_space<vmem>>, %arg3: memref<8x1xf32, #tpu.memory_space<vmem>>, %arg4: memref<8x1xf32, #tpu.memory_space<vmem>>) attributes {dimension_semantics = [#tpu.dimension_semantics<parallel>, #tpu.dimension_semantics<arbitrary>], iteration_bounds = array<i64: 1, 1>, scalar_prefetch = 0 : i64, scratch_operands = 0 : i64, tpu.core_type = #tpu.core_type<tc>, window_params = [{transform_indices = @transform_0, window_bounds = array<i64: 8, 256>}, {transform_indices = @transform_1, window_bounds = array<i64: 8, 1>}, {transform_indices = @transform_2, window_bounds = array<i64: 8, 1>}]} {
    %c0_i32 = arith.constant 0 : i32
    %0 = arith.cmpi eq, %arg1, %c0_i32 : i32
    %1 = arith.extui %0 : i1 to i32
    %c0_i32_0 = arith.constant 0 : i32
    %2 = arith.cmpi ne, %1, %c0_i32_0 : i32
    scf.if %2 {
      %cst_11 = arith.constant 0.000000e+00 : f32
      %15 = vector.broadcast %cst_11 : f32 to vector<8x1xf32>
      %c0_12 = arith.constant 0 : index
      %c0_13 = arith.constant 0 : index
      %16 = vector.load %arg3[%c0_12, %c0_13] : memref<8x1xf32, #tpu.memory_space<vmem>>, vector<8x1xf32>
      tpu.vector_store %arg3[%c0_12, %c0_13], %15 {strides = array<i32>} : memref<8x1xf32, #tpu.memory_space<vmem>>, vector<8x1xf32>,
      %cst_14 = arith.constant 0.000000e+00 : f32
      %17 = vector.broadcast %cst_14 : f32 to vector<8x1xf32>
      %c0_15 = arith.constant 0 : index
      %c0_16 = arith.constant 0 : index
      %18 = vector.load %arg4[%c0_15, %c0_16] : memref<8x1xf32, #tpu.memory_space<vmem>>, vector<8x1xf32>
      tpu.vector_store %arg4[%c0_15, %c0_16], %17 {strides = array<i32>} : memref<8x1xf32, #tpu.memory_space<vmem>>, vector<8x1xf32>,
    } else {
    }
    %c0 = arith.constant 0 : index
    %c0_1 = arith.constant 0 : index
    %3 = vector.load %arg2[%c0, %c0_1] : memref<8x256xf32, #tpu.memory_space<vmem>>, vector<8x256xf32>
    %c0_2 = arith.constant 0 : index
    %c0_3 = arith.constant 0 : index
    %4 = vector.load %arg3[%c0_2, %c0_3] : memref<8x1xf32, #tpu.memory_space<vmem>>, vector<8x1xf32>
    %cst = arith.constant dense<0.000000e+00> : vector<8xf32>
    %5 = vector.multi_reduction <add>, %3, %cst [1] : vector<8x256xf32> to vector<8xf32>
    %6 = vector.shape_cast %5 : vector<8xf32> to vector<8x1xf32>
    %7 = arith.addf %4, %6 : vector<8x1xf32>
    %c0_4 = arith.constant 0 : index
    %c0_5 = arith.constant 0 : index
    %8 = vector.load %arg3[%c0_4, %c0_5] : memref<8x1xf32, #tpu.memory_space<vmem>>, vector<8x1xf32>
    tpu.vector_store %arg3[%c0_4, %c0_5], %7 {strides = array<i32>} : memref<8x1xf32, #tpu.memory_space<vmem>>, vector<8x1xf32>,
    %c0_6 = arith.constant 0 : index
    %c0_7 = arith.constant 0 : index
    %9 = vector.load %arg4[%c0_6, %c0_7] : memref<8x1xf32, #tpu.memory_space<vmem>>, vector<8x1xf32>
    %10 = arith.mulf %3, %3 : vector<8x256xf32>
    %cst_8 = arith.constant dense<0.000000e+00> : vector<8xf32>
    %11 = vector.multi_reduction <add>, %10, %cst_8 [1] : vector<8x256xf32> to vector<8xf32>
    %12 = vector.shape_cast %11 : vector<8xf32> to vector<8x1xf32>
    %13 = arith.addf %9, %12 : vector<8x1xf32>
    %c0_9 = arith.constant 0 : index
    %c0_10 = arith.constant 0 : index
    %14 = vector.load %arg4[%c0_9, %c0_10] : memref<8x1xf32, #tpu.memory_space<vmem>>, vector<8x1xf32>
    tpu.vector_store %arg4[%c0_9, %c0_10], %13 {strides = array<i32>} : memref<8x1xf32, #tpu.memory_space<vmem>>, vector<8x1xf32>,
    return
  }
  func.func @transform_0(%arg0: i32, %arg1: i32) -> (i32, i32) {
    %c0_i32 = arith.constant 0 : i32
    return %arg0, %arg1 : i32, i32
  }
  func.func @transform_1(%arg0: i32, %arg1: i32) -> (i32, i32) {
    %c0_i32 = arith.constant 0 : i32
    %c0_i32_0 = arith.constant 0 : i32
    return %arg0, %c0_i32 : i32, i32
  }
  func.func @transform_2(%arg0: i32, %arg1: i32) -> (i32, i32) {
    %c0_i32 = arith.constant 0 : i32
    %c0_i32_0 = arith.constant 0 : i32
    return %arg0, %c0_i32 : i32, i32
  }
}

module attributes {stable_mosaic.version = 11 : i64} {
  func.func @_spade_fused_kernel(%arg0: i32, %arg1: i32, %arg2: memref<1x1x8x218xbf16, #tpu.memory_space<vmem>>, %arg3: memref<1x1x4x144xf32, #tpu.memory_space<vmem>>, %arg4: memref<1x1x180xf32, #tpu.memory_space<vmem>>, %arg5: memref<32x72xbf16, #tpu.memory_space<vmem>>, %arg6: memref<32x1xf32, #tpu.memory_space<vmem>>, %arg7: memref<16x288xbf16, #tpu.memory_space<vmem>>, %arg8: memref<16x1xf32, #tpu.memory_space<vmem>>, %arg9: memref<4x1xf32, #tpu.memory_space<vmem>>, %arg10: memref<4x1xf32, #tpu.memory_space<vmem>>, %arg11: memref<1x1x4x144xf32, #tpu.memory_space<vmem>>, %arg12: memref<32x384xbf16, #tpu.memory_space<vmem>>, %arg13: memref<72x180xbf16, #tpu.memory_space<vmem>>) attributes {dimension_semantics = [#tpu.dimension_semantics<parallel>, #tpu.dimension_semantics<parallel>], iteration_bounds = array<i64: 2, 2>, scalar_prefetch = 0 : i64, scratch_operands = 2 : i64, tpu.core_type = #tpu.core_type<tc>, window_params = [{transform_indices = @transform_0, window_bounds = array<i64: 1, 1, 8, 218>}, {transform_indices = @transform_1, window_bounds = array<i64: 1, 1, 4, 144>}, {transform_indices = @transform_2, window_bounds = array<i64: 1, 1, 180>}, {pipeline_mode = #tpu.pipeline_mode<synchronous>, transform_indices = @transform_3, window_bounds = array<i64: 32, 72>}, {pipeline_mode = #tpu.pipeline_mode<synchronous>, transform_indices = @transform_4, window_bounds = array<i64: 32, 1>}, {pipeline_mode = #tpu.pipeline_mode<synchronous>, transform_indices = @transform_5, window_bounds = array<i64: 16, 288>}, {pipeline_mode = #tpu.pipeline_mode<synchronous>, transform_indices = @transform_6, window_bounds = array<i64: 16, 1>}, {pipeline_mode = #tpu.pipeline_mode<synchronous>, transform_indices = @transform_7, window_bounds = array<i64: 4, 1>}, {pipeline_mode = #tpu.pipeline_mode<synchronous>, transform_indices = @transform_8, window_bounds = array<i64: 4, 1>}, {transform_indices = @transform_9, window_bounds = array<i64: 1, 1, 4, 144>}]} {
    %c0 = arith.constant 0 : index
    %c0_0 = arith.constant 0 : index
    %c0_1 = arith.constant 0 : index
    %c0_2 = arith.constant 0 : index
    %0 = vector.load %arg2[%c0, %c0_0, %c0_1, %c0_2] : memref<1x1x8x218xbf16, #tpu.memory_space<vmem>>, vector<1x1x8x218xbf16>
    %1 = vector.shape_cast %0 : vector<1x1x8x218xbf16> to vector<8x218xbf16>
    %2 = vector.extract_strided_slice %1 {offsets = [0, 0], sizes = [8, 180], strides = [1, 1]} : vector<8x218xbf16> to vector<8x180xbf16>
    %c0_3 = arith.constant 0 : index
    %c0_4 = arith.constant 0 : index
    %3 = vector.load %arg13[%c0_3, %c0_4] : memref<72x180xbf16, #tpu.memory_space<vmem>>, vector<8x180xbf16>
    tpu.vector_store %arg13[%c0_3, %c0_4], %2 {strides = array<i32>} : memref<72x180xbf16, #tpu.memory_space<vmem>>, vector<8x180xbf16>,
    %4 = vector.extract_strided_slice %1 {offsets = [0, 1], sizes = [8, 180], strides = [1, 1]} : vector<8x218xbf16> to vector<8x180xbf16>
    %c8 = arith.constant 8 : index
    %c0_5 = arith.constant 0 : index
    %5 = vector.load %arg13[%c8, %c0_5] : memref<72x180xbf16, #tpu.memory_space<vmem>>, vector<8x180xbf16>
    tpu.vector_store %arg13[%c8, %c0_5], %4 {strides = array<i32>} : memref<72x180xbf16, #tpu.memory_space<vmem>>, vector<8x180xbf16>,
    %6 = vector.extract_strided_slice %1 {offsets = [0, 2], sizes = [8, 180], strides = [1, 1]} : vector<8x218xbf16> to vector<8x180xbf16>
    %c16 = arith.constant 16 : index
    %c0_6 = arith.constant 0 : index
    %7 = vector.load %arg13[%c16, %c0_6] : memref<72x180xbf16, #tpu.memory_space<vmem>>, vector<8x180xbf16>
    tpu.vector_store %arg13[%c16, %c0_6], %6 {strides = array<i32>} : memref<72x180xbf16, #tpu.memory_space<vmem>>, vector<8x180xbf16>,
    %8 = vector.extract_strided_slice %1 {offsets = [0, 18], sizes = [8, 180], strides = [1, 1]} : vector<8x218xbf16> to vector<8x180xbf16>
    %c24 = arith.constant 24 : index
    %c0_7 = arith.constant 0 : index
    %9 = vector.load %arg13[%c24, %c0_7] : memref<72x180xbf16, #tpu.memory_space<vmem>>, vector<8x180xbf16>
    tpu.vector_store %arg13[%c24, %c0_7], %8 {strides = array<i32>} : memref<72x180xbf16, #tpu.memory_space<vmem>>, vector<8x180xbf16>,
    %10 = vector.extract_strided_slice %1 {offsets = [0, 19], sizes = [8, 180], strides = [1, 1]} : vector<8x218xbf16> to vector<8x180xbf16>
    %c32 = arith.constant 32 : index
    %c0_8 = arith.constant 0 : index
    %11 = vector.load %arg13[%c32, %c0_8] : memref<72x180xbf16, #tpu.memory_space<vmem>>, vector<8x180xbf16>
    tpu.vector_store %arg13[%c32, %c0_8], %10 {strides = array<i32>} : memref<72x180xbf16, #tpu.memory_space<vmem>>, vector<8x180xbf16>,
    %12 = vector.extract_strided_slice %1 {offsets = [0, 20], sizes = [8, 180], strides = [1, 1]} : vector<8x218xbf16> to vector<8x180xbf16>
    %c40 = arith.constant 40 : index
    %c0_9 = arith.constant 0 : index
    %13 = vector.load %arg13[%c40, %c0_9] : memref<72x180xbf16, #tpu.memory_space<vmem>>, vector<8x180xbf16>
    tpu.vector_store %arg13[%c40, %c0_9], %12 {strides = array<i32>} : memref<72x180xbf16, #tpu.memory_space<vmem>>, vector<8x180xbf16>,
    %14 = vector.extract_strided_slice %1 {offsets = [0, 36], sizes = [8, 180], strides = [1, 1]} : vector<8x218xbf16> to vector<8x180xbf16>
    %c48 = arith.constant 48 : index
    %c0_10 = arith.constant 0 : index
    %15 = vector.load %arg13[%c48, %c0_10] : memref<72x180xbf16, #tpu.memory_space<vmem>>, vector<8x180xbf16>
    tpu.vector_store %arg13[%c48, %c0_10], %14 {strides = array<i32>} : memref<72x180xbf16, #tpu.memory_space<vmem>>, vector<8x180xbf16>,
    %16 = vector.extract_strided_slice %1 {offsets = [0, 37], sizes = [8, 180], strides = [1, 1]} : vector<8x218xbf16> to vector<8x180xbf16>
    %c56 = arith.constant 56 : index
    %c0_11 = arith.constant 0 : index
    %17 = vector.load %arg13[%c56, %c0_11] : memref<72x180xbf16, #tpu.memory_space<vmem>>, vector<8x180xbf16>
    tpu.vector_store %arg13[%c56, %c0_11], %16 {strides = array<i32>} : memref<72x180xbf16, #tpu.memory_space<vmem>>, vector<8x180xbf16>,
    %18 = vector.extract_strided_slice %1 {offsets = [0, 38], sizes = [8, 180], strides = [1, 1]} : vector<8x218xbf16> to vector<8x180xbf16>
    %c64 = arith.constant 64 : index
    %c0_12 = arith.constant 0 : index
    %19 = vector.load %arg13[%c64, %c0_12] : memref<72x180xbf16, #tpu.memory_space<vmem>>, vector<8x180xbf16>
    tpu.vector_store %arg13[%c64, %c0_12], %18 {strides = array<i32>} : memref<72x180xbf16, #tpu.memory_space<vmem>>, vector<8x180xbf16>,
    %c0_13 = arith.constant 0 : index
    %c0_14 = arith.constant 0 : index
    %20 = vector.load %arg5[%c0_13, %c0_14] : memref<32x72xbf16, #tpu.memory_space<vmem>>, vector<32x72xbf16>
    %c0_15 = arith.constant 0 : index
    %c0_16 = arith.constant 0 : index
    %21 = vector.load %arg13[%c0_15, %c0_16] : memref<72x180xbf16, #tpu.memory_space<vmem>>, vector<72x180xbf16>
    %cst = arith.constant dense<0.000000e+00> : vector<32x180xf32>
    %22 = tpu.matmul %20, %21, %cst {dimension_numbers = #tpu.dot_dimension_numbers<[1], [0], [0], [1], [0, 0, 1, 1], [], []>} : vector<32x72xbf16>, vector<72x180xbf16>, vector<32x180xf32> -> vector<32x180xf32>
    %c0_17 = arith.constant 0 : index
    %c0_18 = arith.constant 0 : index
    %23 = vector.load %arg6[%c0_17, %c0_18] : memref<32x1xf32, #tpu.memory_space<vmem>>, vector<32x1xf32>
    %24 = vector.broadcast %23 : vector<32x1xf32> to vector<32x180xf32>
    %25 = arith.addf %22, %24 : vector<32x180xf32>
    %c0_19 = arith.constant 0 : index
    %c0_20 = arith.constant 0 : index
    %c0_21 = arith.constant 0 : index
    %26 = vector.load %arg4[%c0_19, %c0_20, %c0_21] : memref<1x1x180xf32, #tpu.memory_space<vmem>>, vector<1x1x180xf32>
    %27 = vector.shape_cast %26 : vector<1x1x180xf32> to vector<1x180xf32>
    %28 = vector.broadcast %27 : vector<1x180xf32> to vector<32x180xf32>
    %29 = arith.mulf %25, %28 : vector<32x180xf32>
    %cst_22 = arith.constant 0.000000e+00 : bf16
    %30 = vector.broadcast %cst_22 : bf16 to vector<32x128xbf16>
    %c0_23 = arith.constant 0 : index
    %c0_24 = arith.constant 0 : index
    %31 = vector.load %arg12[%c0_23, %c0_24] : memref<32x384xbf16, #tpu.memory_space<vmem>>, vector<32x128xbf16>
    tpu.vector_store %arg12[%c0_23, %c0_24], %30 {strides = array<i32>} : memref<32x384xbf16, #tpu.memory_space<vmem>>, vector<32x128xbf16>,
    %cst_25 = arith.constant 0.000000e+00 : bf16
    %32 = vector.broadcast %cst_25 : bf16 to vector<32x76xbf16>
    %c0_26 = arith.constant 0 : index
    %c308 = arith.constant 308 : index
    %33 = vector.load %arg12[%c0_26, %c308] : memref<32x384xbf16, #tpu.memory_space<vmem>>, vector<32x76xbf16>
    tpu.vector_store %arg12[%c0_26, %c308], %32 {strides = array<i32>} : memref<32x384xbf16, #tpu.memory_space<vmem>>, vector<32x76xbf16>,
    %34 = arith.truncf %29 : vector<32x180xf32> to vector<32x180xbf16>
    %c0_27 = arith.constant 0 : index
    %c128 = arith.constant 128 : index
    %35 = vector.load %arg12[%c0_27, %c128] : memref<32x384xbf16, #tpu.memory_space<vmem>>, vector<32x180xbf16>
    tpu.vector_store %arg12[%c0_27, %c128], %34 {strides = array<i32>} : memref<32x384xbf16, #tpu.memory_space<vmem>>, vector<32x180xbf16>,
    %cst_28 = arith.constant 0.000000e+00 : f32
    %36 = vector.broadcast %cst_28 : f32 to vector<16x144xf32>
    %c0_29 = arith.constant 0 : index
    %c0_30 = arith.constant 0 : index
    %37 = vector.load %arg7[%c0_29, %c0_30] : memref<16x288xbf16, #tpu.memory_space<vmem>>, vector<16x32xbf16>
    %c0_31 = arith.constant 0 : index
    %c127 = arith.constant 127 : index
    %38 = vector.load %arg12[%c0_31, %c127] : memref<32x384xbf16, #tpu.memory_space<vmem>>, vector<32x144xbf16>
    %cst_32 = arith.constant dense<0.000000e+00> : vector<16x144xf32>
    %39 = tpu.matmul %37, %38, %cst_32 {dimension_numbers = #tpu.dot_dimension_numbers<[1], [0], [0], [1], [0, 0, 1, 1], [], []>} : vector<16x32xbf16>, vector<32x144xbf16>, vector<16x144xf32> -> vector<16x144xf32>
    %40 = arith.addf %36, %39 : vector<16x144xf32>
    %c0_33 = arith.constant 0 : index
    %c32_34 = arith.constant 32 : index
    %41 = vector.load %arg7[%c0_33, %c32_34] : memref<16x288xbf16, #tpu.memory_space<vmem>>, vector<16x32xbf16>
    %c0_35 = arith.constant 0 : index
    %c128_36 = arith.constant 128 : index
    %42 = vector.load %arg12[%c0_35, %c128_36] : memref<32x384xbf16, #tpu.memory_space<vmem>>, vector<32x144xbf16>
    %cst_37 = arith.constant dense<0.000000e+00> : vector<16x144xf32>
    %43 = tpu.matmul %41, %42, %cst_37 {dimension_numbers = #tpu.dot_dimension_numbers<[1], [0], [0], [1], [0, 0, 1, 1], [], []>} : vector<16x32xbf16>, vector<32x144xbf16>, vector<16x144xf32> -> vector<16x144xf32>
    %44 = arith.addf %40, %43 : vector<16x144xf32>
    %c0_38 = arith.constant 0 : index
    %c64_39 = arith.constant 64 : index
    %45 = vector.load %arg7[%c0_38, %c64_39] : memref<16x288xbf16, #tpu.memory_space<vmem>>, vector<16x32xbf16>
    %c0_40 = arith.constant 0 : index
    %c129 = arith.constant 129 : index
    %46 = vector.load %arg12[%c0_40, %c129] : memref<32x384xbf16, #tpu.memory_space<vmem>>, vector<32x144xbf16>
    %cst_41 = arith.constant dense<0.000000e+00> : vector<16x144xf32>
    %47 = tpu.matmul %45, %46, %cst_41 {dimension_numbers = #tpu.dot_dimension_numbers<[1], [0], [0], [1], [0, 0, 1, 1], [], []>} : vector<16x32xbf16>, vector<32x144xbf16>, vector<16x144xf32> -> vector<16x144xf32>
    %48 = arith.addf %44, %47 : vector<16x144xf32>
    %c0_42 = arith.constant 0 : index
    %c96 = arith.constant 96 : index
    %49 = vector.load %arg7[%c0_42, %c96] : memref<16x288xbf16, #tpu.memory_space<vmem>>, vector<16x32xbf16>
    %c0_43 = arith.constant 0 : index
    %c145 = arith.constant 145 : index
    %50 = vector.load %arg12[%c0_43, %c145] : memref<32x384xbf16, #tpu.memory_space<vmem>>, vector<32x144xbf16>
    %cst_44 = arith.constant dense<0.000000e+00> : vector<16x144xf32>
    %51 = tpu.matmul %49, %50, %cst_44 {dimension_numbers = #tpu.dot_dimension_numbers<[1], [0], [0], [1], [0, 0, 1, 1], [], []>} : vector<16x32xbf16>, vector<32x144xbf16>, vector<16x144xf32> -> vector<16x144xf32>
    %52 = arith.addf %48, %51 : vector<16x144xf32>
    %c0_45 = arith.constant 0 : index
    %c128_46 = arith.constant 128 : index
    %53 = vector.load %arg7[%c0_45, %c128_46] : memref<16x288xbf16, #tpu.memory_space<vmem>>, vector<16x32xbf16>
    %c0_47 = arith.constant 0 : index
    %c146 = arith.constant 146 : index
    %54 = vector.load %arg12[%c0_47, %c146] : memref<32x384xbf16, #tpu.memory_space<vmem>>, vector<32x144xbf16>
    %cst_48 = arith.constant dense<0.000000e+00> : vector<16x144xf32>
    %55 = tpu.matmul %53, %54, %cst_48 {dimension_numbers = #tpu.dot_dimension_numbers<[1], [0], [0], [1], [0, 0, 1, 1], [], []>} : vector<16x32xbf16>, vector<32x144xbf16>, vector<16x144xf32> -> vector<16x144xf32>
    %56 = arith.addf %52, %55 : vector<16x144xf32>
    %c0_49 = arith.constant 0 : index
    %c160 = arith.constant 160 : index
    %57 = vector.load %arg7[%c0_49, %c160] : memref<16x288xbf16, #tpu.memory_space<vmem>>, vector<16x32xbf16>
    %c0_50 = arith.constant 0 : index
    %c147 = arith.constant 147 : index
    %58 = vector.load %arg12[%c0_50, %c147] : memref<32x384xbf16, #tpu.memory_space<vmem>>, vector<32x144xbf16>
    %cst_51 = arith.constant dense<0.000000e+00> : vector<16x144xf32>
    %59 = tpu.matmul %57, %58, %cst_51 {dimension_numbers = #tpu.dot_dimension_numbers<[1], [0], [0], [1], [0, 0, 1, 1], [], []>} : vector<16x32xbf16>, vector<32x144xbf16>, vector<16x144xf32> -> vector<16x144xf32>
    %60 = arith.addf %56, %59 : vector<16x144xf32>
    %c0_52 = arith.constant 0 : index
    %c192 = arith.constant 192 : index
    %61 = vector.load %arg7[%c0_52, %c192] : memref<16x288xbf16, #tpu.memory_space<vmem>>, vector<16x32xbf16>
    %c0_53 = arith.constant 0 : index
    %c163 = arith.constant 163 : index
    %62 = vector.load %arg12[%c0_53, %c163] : memref<32x384xbf16, #tpu.memory_space<vmem>>, vector<32x144xbf16>
    %cst_54 = arith.constant dense<0.000000e+00> : vector<16x144xf32>
    %63 = tpu.matmul %61, %62, %cst_54 {dimension_numbers = #tpu.dot_dimension_numbers<[1], [0], [0], [1], [0, 0, 1, 1], [], []>} : vector<16x32xbf16>, vector<32x144xbf16>, vector<16x144xf32> -> vector<16x144xf32>
    %64 = arith.addf %60, %63 : vector<16x144xf32>
    %c0_55 = arith.constant 0 : index
    %c224 = arith.constant 224 : index
    %65 = vector.load %arg7[%c0_55, %c224] : memref<16x288xbf16, #tpu.memory_space<vmem>>, vector<16x32xbf16>
    %c0_56 = arith.constant 0 : index
    %c164 = arith.constant 164 : index
    %66 = vector.load %arg12[%c0_56, %c164] : memref<32x384xbf16, #tpu.memory_space<vmem>>, vector<32x144xbf16>
    %cst_57 = arith.constant dense<0.000000e+00> : vector<16x144xf32>
    %67 = tpu.matmul %65, %66, %cst_57 {dimension_numbers = #tpu.dot_dimension_numbers<[1], [0], [0], [1], [0, 0, 1, 1], [], []>} : vector<16x32xbf16>, vector<32x144xbf16>, vector<16x144xf32> -> vector<16x144xf32>
    %68 = arith.addf %64, %67 : vector<16x144xf32>
    %c0_58 = arith.constant 0 : index
    %c256 = arith.constant 256 : index
    %69 = vector.load %arg7[%c0_58, %c256] : memref<16x288xbf16, #tpu.memory_space<vmem>>, vector<16x32xbf16>
    %c0_59 = arith.constant 0 : index
    %c165 = arith.constant 165 : index
    %70 = vector.load %arg12[%c0_59, %c165] : memref<32x384xbf16, #tpu.memory_space<vmem>>, vector<32x144xbf16>
    %cst_60 = arith.constant dense<0.000000e+00> : vector<16x144xf32>
    %71 = tpu.matmul %69, %70, %cst_60 {dimension_numbers = #tpu.dot_dimension_numbers<[1], [0], [0], [1], [0, 0, 1, 1], [], []>} : vector<16x32xbf16>, vector<32x144xbf16>, vector<16x144xf32> -> vector<16x144xf32>
    %72 = arith.addf %68, %71 : vector<16x144xf32>
    %c0_61 = arith.constant 0 : index
    %c0_62 = arith.constant 0 : index
    %73 = vector.load %arg8[%c0_61, %c0_62] : memref<16x1xf32, #tpu.memory_space<vmem>>, vector<16x1xf32>
    %74 = vector.broadcast %73 : vector<16x1xf32> to vector<16x144xf32>
    %75 = arith.addf %72, %74 : vector<16x144xf32>
    %76 = vector.extract_strided_slice %75 {offsets = [0, 0], sizes = [4, 144], strides = [1, 1]} : vector<16x144xf32> to vector<4x144xf32>
    %77 = vector.extract_strided_slice %75 {offsets = [8, 0], sizes = [4, 144], strides = [1, 1]} : vector<16x144xf32> to vector<4x144xf32>
    %c0_63 = arith.constant 0 : index
    %c0_64 = arith.constant 0 : index
    %c0_65 = arith.constant 0 : index
    %c0_66 = arith.constant 0 : index
    %78 = vector.load %arg3[%c0_63, %c0_64, %c0_65, %c0_66] : memref<1x1x4x144xf32, #tpu.memory_space<vmem>>, vector<1x1x4x144xf32>
    %79 = vector.shape_cast %78 : vector<1x1x4x144xf32> to vector<4x144xf32>
    %c0_67 = arith.constant 0 : index
    %c0_68 = arith.constant 0 : index
    %80 = vector.load %arg9[%c0_67, %c0_68] : memref<4x1xf32, #tpu.memory_space<vmem>>, vector<4x1xf32>
    %81 = vector.broadcast %80 : vector<4x1xf32> to vector<4x144xf32>
    %82 = arith.subf %79, %81 : vector<4x144xf32>
    %c0_69 = arith.constant 0 : index
    %c0_70 = arith.constant 0 : index
    %83 = vector.load %arg10[%c0_69, %c0_70] : memref<4x1xf32, #tpu.memory_space<vmem>>, vector<4x1xf32>
    %84 = vector.broadcast %83 : vector<4x1xf32> to vector<4x144xf32>
    %85 = arith.mulf %82, %84 : vector<4x144xf32>
    %cst_71 = arith.constant 1.000000e+00 : f32
    %86 = vector.broadcast %cst_71 : f32 to vector<4x144xf32>
    %87 = arith.addf %86, %76 : vector<4x144xf32>
    %88 = arith.mulf %87, %85 : vector<4x144xf32>
    %89 = arith.addf %88, %77 : vector<4x144xf32>
    %c0_72 = arith.constant 0 : index
    %c0_73 = arith.constant 0 : index
    %c0_74 = arith.constant 0 : index
    %c0_75 = arith.constant 0 : index
    %90 = vector.load %arg11[%c0_72, %c0_73, %c0_74, %c0_75] : memref<1x1x4x144xf32, #tpu.memory_space<vmem>>, vector<1x1x4x144xf32>
    %91 = vector.shape_cast %90 : vector<1x1x4x144xf32> to vector<4x144xf32>
    %92 = vector.shape_cast %89 : vector<4x144xf32> to vector<1x1x4x144xf32>
    tpu.vector_store %arg11[%c0_72, %c0_73, %c0_74, %c0_75], %92 {strides = array<i32>} : memref<1x1x4x144xf32, #tpu.memory_space<vmem>>, vector<1x1x4x144xf32>,
    return
  }
  func.func @transform_0(%arg0: i32, %arg1: i32) -> (i32, i32, i32, i32) {
    %c0_i32 = arith.constant 0 : i32
    %c0_i32_0 = arith.constant 0 : i32
    %c0_i32_1 = arith.constant 0 : i32
    return %arg0, %arg1, %c0_i32, %c0_i32_0 : i32, i32, i32, i32
  }
  func.func @transform_1(%arg0: i32, %arg1: i32) -> (i32, i32, i32, i32) {
    %c0_i32 = arith.constant 0 : i32
    %c0_i32_0 = arith.constant 0 : i32
    %c0_i32_1 = arith.constant 0 : i32
    return %arg0, %arg1, %c0_i32, %c0_i32_0 : i32, i32, i32, i32
  }
  func.func @transform_2(%arg0: i32, %arg1: i32) -> (i32, i32, i32) {
    %c0_i32 = arith.constant 0 : i32
    %c0_i32_0 = arith.constant 0 : i32
    %c0_i32_1 = arith.constant 0 : i32
    return %arg1, %c0_i32, %c0_i32_0 : i32, i32, i32
  }
  func.func @transform_3(%arg0: i32, %arg1: i32) -> (i32, i32) {
    %c0_i32 = arith.constant 0 : i32
    %c0_i32_0 = arith.constant 0 : i32
    %c0_i32_1 = arith.constant 0 : i32
    return %c0_i32, %c0_i32_0 : i32, i32
  }
  func.func @transform_4(%arg0: i32, %arg1: i32) -> (i32, i32) {
    %c0_i32 = arith.constant 0 : i32
    %c0_i32_0 = arith.constant 0 : i32
    %c0_i32_1 = arith.constant 0 : i32
    return %c0_i32, %c0_i32_0 : i32, i32
  }
  func.func @transform_5(%arg0: i32, %arg1: i32) -> (i32, i32) {
    %c0_i32 = arith.constant 0 : i32
    %c0_i32_0 = arith.constant 0 : i32
    %c0_i32_1 = arith.constant 0 : i32
    return %c0_i32, %c0_i32_0 : i32, i32
  }
  func.func @transform_6(%arg0: i32, %arg1: i32) -> (i32, i32) {
    %c0_i32 = arith.constant 0 : i32
    %c0_i32_0 = arith.constant 0 : i32
    %c0_i32_1 = arith.constant 0 : i32
    return %c0_i32, %c0_i32_0 : i32, i32
  }
  func.func @transform_7(%arg0: i32, %arg1: i32) -> (i32, i32) {
    %c0_i32 = arith.constant 0 : i32
    %c0_i32_0 = arith.constant 0 : i32
    %c0_i32_1 = arith.constant 0 : i32
    return %c0_i32, %c0_i32_0 : i32, i32
  }
  func.func @transform_8(%arg0: i32, %arg1: i32) -> (i32, i32) {
    %c0_i32 = arith.constant 0 : i32
    %c0_i32_0 = arith.constant 0 : i32
    %c0_i32_1 = arith.constant 0 : i32
    return %c0_i32, %c0_i32_0 : i32, i32
  }
  func.func @transform_9(%arg0: i32, %arg1: i32) -> (i32, i32, i32, i32) {
    %c0_i32 = arith.constant 0 : i32
    %c0_i32_0 = arith.constant 0 : i32
    %c0_i32_1 = arith.constant 0 : i32
    return %arg0, %arg1, %c0_i32, %c0_i32_0 : i32, i32, i32, i32
  }
}

</mosaic_0001>

<llo_original>
// kernel: spade_forward.2
$region0: #{spade_forward.2}
  #allocation0 [shape = 'u32[]', space=smem, size = 0x4, offset = 0x4, fixed_abs, tag = 'smem constant byte address 0x4 - core index']
  #allocation1 [shape = 'u32[72,128]{1,0:T(1,128)}', space=vmem, size = 0x9000, scoped, tag = 'internal scratch']
  %s0 = inlined_call_operand.vmem [shape: f32[8,256], index: 0, kind: input, shape index: {}]
  %s1 = inlined_call_operand.vmem [shape: f32[8,1], index: 1, kind: output, shape index: {0}]
  %s2 = inlined_call_operand.vmem [shape: f32[8,1], index: 2, kind: output, shape index: {1}]
  %3 = xla_tuple %s1, %s2
  %s4 = sld [smem:[#allocation0]]
  $region26: #{spade_forward.2} parent=0
    _
  %s6 = ssub.s32 1, %s4
  %s7 = scalar_select 0, %s6, %s4
  // Predicated region
  $region2: #{spade_forward.2} parent=0 // pred_check
    _
  $region3: #{spade_forward.2} parent=0 // pred_check_branch
    %9 = sbr.rel (0) target = $region5
  $region4: #{spade_forward.2} parent=0 // pred_region
    _
  $region5: #{spade_forward.2} parent=0 // pred_fallthru
    _
  %p10 = scmp.eq.s32.totalorder 0, 0
  // Predicated region
  $region6: #{spade_forward.2} parent=0 // pred_check
    %p11 = pneg %p10
  $region7: #{spade_forward.2} parent=0 // pred_check_branch
    %13 = sbr.rel (%p11) target = $region9
  $region8: #{spade_forward.2} parent=0 // pred_region
    %vm14 = vcmask 7168
    %15 = vst.msk [vmem:[%s1] sm:$0xff] %vm14, 0.0
    %16 = vst.msk [vmem:[%s2] sm:$0xff] %vm14, 0.0
  $region9: #{spade_forward.2} parent=0 // pred_fallthru
    _
  %v17 = vld [vmem:[%s0] sm:$0xff]
  %v18 = vld [vmem:[%s0 + $0x8] sm:$0xff]
  %v19 = vld [vmem:[%s1] sm:$0xff]
  %v20 = vadd.f32 %v17, %v18
  %21 = vadd.xlane.f32.xlu0 %v20
  %v22 = vpop.xlane.xlu0 %21
  %v23 = vadd.f32 %v19, %v22
  %vm24 = vcmask 7168
  %25 = vst.msk [vmem:[%s1] sm:$0xff] %vm24, %v23
  %v26 = vld [vmem:[%s2] sm:$0xff]
  %v27 = vmul.f32 %v17, %v17
  %v28 = vmul.f32 %v18, %v18
  %v29 = vadd.f32 %v27, %v28
  %30 = vadd.xlane.f32.xlu0 %v29
  %v31 = vpop.xlane.xlu0 %30
  %v32 = vadd.f32 %v26, %v31
  %33 = vst.msk [vmem:[%s2] sm:$0xff] %vm24, %v32
  // Predicated region
  $region10: #{spade_forward.2} parent=0 // pred_check
    _
  $region11: #{spade_forward.2} parent=0 // pred_check_branch
    %35 = sbr.rel (0) target = $region13
  $region12: #{spade_forward.2} parent=0 // pred_region
    _
  $region13: #{spade_forward.2} parent=0 // pred_fallthru
    _
  // Predicated region
  $region14: #{spade_forward.2} parent=0 // pred_check
    _
  $region15: #{spade_forward.2} parent=0 // pred_check_branch
    %37 = sbr.rel (0) target = $region17
  $region16: #{spade_forward.2} parent=0 // pred_region
    _
  $region17: #{spade_forward.2} parent=0 // pred_fallthru
    _
  // Predicated region
  $region18: #{spade_forward.2} parent=0 // pred_check
    _
  $region19: #{spade_forward.2} parent=0 // pred_check_branch
    %39 = sbr.rel (0) target = $region21
  $region20: #{spade_forward.2} parent=0 // pred_region
    _
  $region21: #{spade_forward.2} parent=0 // pred_fallthru
    _
  // Predicated region
  $region22: #{spade_forward.2} parent=0 // pred_check
    _
  $region23: #{spade_forward.2} parent=0 // pred_check_branch
    %41 = sbr.rel (0) target = $region25
  $region24: #{spade_forward.2} parent=0 // pred_region
    _
  $region25: #{spade_forward.2} parent=0 // pred_fallthru
    _

// kernel: spade_forward.3
$region0: #{spade_forward.3}
  #allocation0 [shape = 'u32[]', space=smem, size = 0x4, offset = 0x4, fixed_abs, tag = 'smem constant byte address 0x4 - core index']
  #allocation1 [shape = 'u32[72,128]{1,0:T(1,128)}', space=vmem, size = 0x9000, scoped, tag = 'internal scratch']
  #allocation2 [shape = 'bf16[32,384]{1,0:T(8,128)(2,1)}', space=vmem, size = 0x6000, scoped, tag = 'scratch operand']
  #allocation3 [shape = 'bf16[72,180]{1,0:T(8,128)(2,1)}', space=vmem, size = 0x9000, scoped, tag = 'scratch operand']
  %s0 = inlined_call_operand.vmem [shape: bf16[2,2,8,218], index: 0, kind: input, shape index: {}]
  %s1 = inlined_call_operand.vmem [shape: f32[2,2,4,144], index: 1, kind: input, shape index: {}]
  %s2 = inlined_call_operand.vmem [shape: f32[2,1,180], index: 2, kind: input, shape index: {}]
  %s3 = inlined_call_operand.vmem [shape: bf16[32,72], index: 3, kind: input, shape index: {}]
  %s4 = inlined_call_operand.vmem [shape: f32[32,1], index: 4, kind: input, shape index: {}]
  %s5 = inlined_call_operand.vmem [shape: bf16[16,288], index: 5, kind: input, shape index: {}]
  %s6 = inlined_call_operand.vmem [shape: f32[16,1], index: 6, kind: input, shape index: {}]
  %s7 = inlined_call_operand.vmem [shape: f32[4,1], index: 7, kind: input, shape index: {}]
  %s8 = inlined_call_operand.vmem [shape: f32[4,1], index: 8, kind: input, shape index: {}]
  %s9 = inlined_call_operand.vmem [shape: f32[2,2,4,144], index: 9, kind: output, shape index: {}]
  %s10 = sld [smem:[#allocation0]]
  $region69: #{spade_forward.3} parent=0
    _
  %s12 = ssub.s32 1, %s10
  %s13 = scalar_select 0, %s12, %s10
  loop: start=0, step=1, limit=6
  $region2: #{spade_forward.3} parent=0 // loop_pre_header
    _
  $region3: #{spade_forward.3} parent=0 // loop_header
    %s15 = sphi 0, %s19
    %p16 = scmp.ge.s32.totalorder %s15, 6
    %s22 = sphi 0, %s34
    %s23 = sphi 0, %s30
    %s24 = sphi 0, %s22
    %s25 = sphi 0, %s23
    %s26 = sphi 0, %s24
    %s27 = sphi 0, %s25
    %s39 = sphi 0, %s41
    %s42 = sphi 0, %s39
    %s43 = sphi 0, %s42
    %s59 = sphi 0, %s43
    %s67 = sphi 0, %s69
    %s70 = sphi 0, %s67
    %s71 = sphi 0, %s70
    %s87 = sphi 0, %s71
    %s93 = sphi 0, %s95
    %s96 = sphi 0, %s93
    %s97 = sphi 0, %s96
    %s113 = sphi 0, %s97
    %s117 = sphi 0, %s117
    %s119 = sphi 0, %s117
    %s120 = sphi 0, %s119
    %s134 = sphi 0, %s120
    %s138 = sphi 0, %s138
    %s140 = sphi 0, %s138
    %s141 = sphi 0, %s140
    %s155 = sphi 0, %s141
    %s159 = sphi 0, %s159
    %s161 = sphi 0, %s159
    %s162 = sphi 0, %s161
    %s176 = sphi 0, %s162
    %s180 = sphi 0, %s180
    %s182 = sphi 0, %s180
    %s183 = sphi 0, %s182
    %s197 = sphi 0, %s183
    %s201 = sphi 0, %s201
    %s203 = sphi 0, %s201
    %s204 = sphi 0, %s203
    %s218 = sphi 0, %s204
    %s222 = sphi 0, %s222
    %s224 = sphi 0, %s222
    %s225 = sphi 0, %s224
    %s239 = sphi 0, %s225
    %s247 = sphi 0, %s249
    %s250 = sphi 0, %s247
    %s251 = sphi 0, %s250
    %s267 = sphi 0, %s251
  $region4: #{spade_forward.3} parent=0 // loop_header_branch
    %18 = sbr.rel (%p16) target = $region8
  $region5: #{spade_forward.3} parent=0 // loop_body
    %s20 = ssub.s32 %s15, 1
    %s21 = ssub.s32 %s15, 2
    %s28 = sadd.s32 1, %s23
    %p29 = scmp.ge.s32.totalorder %s28, 2
    %s30 = scalar_select %p29, 0, %s28
    %s31 = sadd.s32 1, %s22
    %s32 = scalar_select %p29, %s31, %s22
    %p33 = scmp.ge.s32.totalorder %s32, 2
    %s34 = scalar_select %p33, 0, %s32
    %s35 = ssub.s32 %s22, %s34
    %s36 = ssub.s32 %s23, %s30
    %s37 = sor.u32 %s35, %s36
    %p38 = scmp.eq.s32.totalorder %s37, 0
    %s40 = sadd.s32 %s39, 1
    %s41 = scalar_select %p38, %s39, %s40
    %p44 = pneg %p38
    %p45 = scmp.eq.s32.totalorder %s15, 3
    %p46 = por %p44, %p45
    %p47 = scmp.ne.s32.totalorder %s39, %s42
    %p48 = scmp.eq.s32.totalorder %s15, 0
    %p49 = por %p47, %p48
    %p50 = scmp.ne.s32.totalorder %s39, %s42
    %p51 = scmp.eq.s32.totalorder %s20, 3
    %p52 = por %p50, %p51
    %p53 = scmp.ne.s32.totalorder %s42, %s43
    %p54 = scmp.eq.s32.totalorder %s20, 0
    %p55 = por %p53, %p54
    %p56 = scmp.ne.s32.totalorder %s42, %s43
    %p57 = scmp.eq.s32.totalorder %s21, 3
    %p58 = por %p56, %p57
    %p60 = scmp.ne.s32.totalorder %s43, %s59
    %p61 = scmp.eq.s32.totalorder %s21, 0
    %p62 = por %p60, %p61
    %s63 = ssub.s32 %s22, %s34
    %s64 = ssub.s32 %s23, %s30
    %s65 = sor.u32 %s63, %s64
    %p66 = scmp.eq.s32.totalorder %s65, 0
    %s68 = sadd.s32 %s67, 1
    %s69 = scalar_select %p66, %s67, %s68
    %p72 = pneg %p66
    %p73 = scmp.eq.s32.totalorder %s15, 3
    %p74 = por %p72, %p73
    %p75 = scmp.ne.s32.totalorder %s67, %s70
    %p76 = scmp.eq.s32.totalorder %s15, 0
    %p77 = por %p75, %p76
    %p78 = scmp.ne.s32.totalorder %s67, %s70
    %p79 = scmp.eq.s32.totalorder %s20, 3
    %p80 = por %p78, %p79
    %p81 = scmp.ne.s32.totalorder %s70, %s71
    %p82 = scmp.eq.s32.totalorder %s20, 0
    %p83 = por %p81, %p82
    %p84 = scmp.ne.s32.totalorder %s70, %s71
    %p85 = scmp.eq.s32.totalorder %s21, 3
    %p86 = por %p84, %p85
    %p88 = scmp.ne.s32.totalorder %s71, %s87
    %p89 = scmp.eq.s32.totalorder %s21, 0
    %p90 = por %p88, %p89
    %s91 = ssub.s32 %s23, %s30
    %p92 = scmp.eq.s32.totalorder %s91, 0
    %s94 = sadd.s32 %s93, 1
    %s95 = scalar_select %p92, %s93, %s94
    %p98 = pneg %p92
    %p99 = scmp.eq.s32.totalorder %s15, 3
    %p100 = por %p98, %p99
    %p101 = scmp.ne.s32.totalorder %s93, %s96
    %p102 = scmp.eq.s32.totalorder %s15, 0
    %p103 = por %p101, %p102
    %p104 = scmp.ne.s32.totalorder %s93, %s96
    %p105 = scmp.eq.s32.totalorder %s20, 3
    %p106 = por %p104, %p105
    %p107 = scmp.ne.s32.totalorder %s96, %s97
    %p108 = scmp.eq.s32.totalorder %s20, 0
    %p109 = por %p107, %p108
    %p110 = scmp.ne.s32.totalorder %s96, %s97
    %p111 = scmp.eq.s32.totalorder %s21, 3
    %p112 = por %p110, %p111
    %p114 = scmp.ne.s32.totalorder %s97, %s113
    %p115 = scmp.eq.s32.totalorder %s21, 0
    %p116 = por %p114, %p115
    %s118 = sadd.s32 %s117, 1
    %p121 = scmp.eq.s32.totalorder %s15, 3
    %p122 = scmp.ne.s32.totalorder %s117, %s119
    %p123 = scmp.eq.s32.totalorder %s15, 0
    %p124 = por %p122, %p123
    %p125 = scmp.ne.s32.totalorder %s117, %s119
    %p126 = scmp.eq.s32.totalorder %s20, 3
    %p127 = por %p125, %p126
    %p128 = scmp.ne.s32.totalorder %s119, %s120
    %p129 = scmp.eq.s32.totalorder %s20, 0
    %p130 = por %p128, %p129
    %p131 = scmp.ne.s32.totalorder %s119, %s120
    %p132 = scmp.eq.s32.totalorder %s21, 3
    %p133 = por %p131, %p132
    %p135 = scmp.ne.s32.totalorder %s120, %s134
    %p136 = scmp.eq.s32.totalorder %s21, 0
    %p137 = por %p135, %p136
    %s139 = sadd.s32 %s138, 1
    %p142 = scmp.eq.s32.totalorder %s15, 3
    %p143 = scmp.ne.s32.totalorder %s138, %s140
    %p144 = scmp.eq.s32.totalorder %s15, 0
    %p145 = por %p143, %p144
    %p146 = scmp.ne.s32.totalorder %s138, %s140
    %p147 = scmp.eq.s32.totalorder %s20, 3
    %p148 = por %p146, %p147
    %p149 = scmp.ne.s32.totalorder %s140, %s141
    %p150 = scmp.eq.s32.totalorder %s20, 0
    %p151 = por %p149, %p150
    %p152 = scmp.ne.s32.totalorder %s140, %s141
    %p153 = scmp.eq.s32.totalorder %s21, 3
    %p154 = por %p152, %p153
    %p156 = scmp.ne.s32.totalorder %s141, %s155
    %p157 = scmp.eq.s32.totalorder %s21, 0
    %p158 = por %p156, %p157
    %s160 = sadd.s32 %s159, 1
    %p163 = scmp.eq.s32.totalorder %s15, 3
    %p164 = scmp.ne.s32.totalorder %s159, %s161
    %p165 = scmp.eq.s32.totalorder %s15, 0
    %p166 = por %p164, %p165
    %p167 = scmp.ne.s32.totalorder %s159, %s161
    %p168 = scmp.eq.s32.totalorder %s20, 3
    %p169 = por %p167, %p168
    %p170 = scmp.ne.s32.totalorder %s161, %s162
    %p171 = scmp.eq.s32.totalorder %s20, 0
    %p172 = por %p170, %p171
    %p173 = scmp.ne.s32.totalorder %s161, %s162
    %p174 = scmp.eq.s32.totalorder %s21, 3
    %p175 = por %p173, %p174
    %p177 = scmp.ne.s32.totalorder %s162, %s176
    %p178 = scmp.eq.s32.totalorder %s21, 0
    %p179 = por %p177, %p178
    %s181 = sadd.s32 %s180, 1
    %p184 = scmp.eq.s32.totalorder %s15, 3
    %p185 = scmp.ne.s32.totalorder %s180, %s182
    %p186 = scmp.eq.s32.totalorder %s15, 0
    %p187 = por %p185, %p186
    %p188 = scmp.ne.s32.totalorder %s180, %s182
    %p189 = scmp.eq.s32.totalorder %s20, 3
    %p190 = por %p188, %p189
    %p191 = scmp.ne.s32.totalorder %s182, %s183
    %p192 = scmp.eq.s32.totalorder %s20, 0
    %p193 = por %p191, %p192
    %p194 = scmp.ne.s32.totalorder %s182, %s183
    %p195 = scmp.eq.s32.totalorder %s21, 3
    %p196 = por %p194, %p195
    %p198 = scmp.ne.s32.totalorder %s183, %s197
    %p199 = scmp.eq.s32.totalorder %s21, 0
    %p200 = por %p198, %p199
    %s202 = sadd.s32 %s201, 1
    %p205 = scmp.eq.s32.totalorder %s15, 3
    %p206 = scmp.ne.s32.totalorder %s201, %s203
    %p207 = scmp.eq.s32.totalorder %s15, 0
    %p208 = por %p206, %p207
    %p209 = scmp.ne.s32.totalorder %s201, %s203
    %p210 = scmp.eq.s32.totalorder %s20, 3
    %p211 = por %p209, %p210
    %p212 = scmp.ne.s32.totalorder %s203, %s204
    %p213 = scmp.eq.s32.totalorder %s20, 0
    %p214 = por %p212, %p213
    %p215 = scmp.ne.s32.totalorder %s203, %s204
    %p216 = scmp.eq.s32.totalorder %s21, 3
    %p217 = por %p215, %p216
    %p219 = scmp.ne.s32.totalorder %s204, %s218
    %p220 = scmp.eq.s32.totalorder %s21, 0
    %p221 = por %p219, %p220
    %s223 = sadd.s32 %s222, 1
    %p226 = scmp.eq.s32.totalorder %s15, 3
    %p227 = scmp.ne.s32.totalorder %s222, %s224
    %p228 = scmp.eq.s32.totalorder %s15, 0
    %p229 = por %p227, %p228
    %p230 = scmp.ne.s32.totalorder %s222, %s224
    %p231 = scmp.eq.s32.totalorder %s20, 3
    %p232 = por %p230, %p231
    %p233 = scmp.ne.s32.totalorder %s224, %s225
    %p234 = scmp.eq.s32.totalorder %s20, 0
    %p235 = por %p233, %p234
    %p236 = scmp.ne.s32.totalorder %s224, %s225
    %p237 = scmp.eq.s32.totalorder %s21, 3
    %p238 = por %p236, %p237
    %p240 = scmp.ne.s32.totalorder %s225, %s239
    %p241 = scmp.eq.s32.totalorder %s21, 0
    %p242 = por %p240, %p241
    %s243 = ssub.s32 %s22, %s34
    %s244 = ssub.s32 %s23, %s30
    %s245 = sor.u32 %s243, %s244
    %p246 = scmp.eq.s32.totalorder %s245, 0
    %s248 = sadd.s32 %s247, 1
    %s249 = scalar_select %p246, %s247, %s248
    %p252 = pneg %p246
    %p253 = scmp.eq.s32.totalorder %s15, 3
    %p254 = por %p252, %p253
    %p255 = scmp.ne.s32.totalorder %s247, %s250
    %p256 = scmp.eq.s32.totalorder %s15, 0
    %p257 = por %p255, %p256
    %p258 = scmp.ne.s32.totalorder %s247, %s250
    %p259 = scmp.eq.s32.totalorder %s20, 3
    %p260 = por %p258, %p259
    %p261 = scmp.ne.s32.totalorder %s250, %s251
    %p262 = scmp.eq.s32.totalorder %s20, 0
    %p263 = por %p261, %p262
    %p264 = scmp.ne.s32.totalorder %s250, %s251
    %p265 = scmp.eq.s32.totalorder %s21, 3
    %p266 = por %p264, %p265
    %p268 = scmp.ne.s32.totalorder %s251, %s267
    %p269 = scmp.eq.s32.totalorder %s21, 0
    %p270 = por %p268, %p269
    %p271 = scmp.le.s32.totalorder 1, %s15
    %p272 = scmp.lt.s32.totalorder %s15, 5
    %p273 = pnand %p271, %p272
    %p274 = pneg %p273
    // Predicated region
    $region9: #{spade_forward.3} parent=5 // pred_check
      _
    $region10: #{spade_forward.3} parent=5 // pred_check_branch
      %276 = sbr.rel (%p273) target = $region12
    $region11: #{spade_forward.3} parent=5 // pred_region
      %s277 = ssub.s32 %s15, 1
      // Predicated region
      $region13: #{spade_forward.3} parent=11 // pred_check
        %p278 = pneg %p130
      $region14: #{spade_forward.3} parent=11 // pred_check_branch
        %280 = sbr.rel (%p278) target = $region16
      $region15: #{spade_forward.3} parent=11 // pred_region
        _
      $region16: #{spade_forward.3} parent=11 // pred_fallthru
        _
      // Predicated region
      $region17: #{spade_forward.3} parent=11 // pred_check
        %p281 = pneg %p151
      $region18: #{spade_forward.3} parent=11 // pred_check_branch
        %283 = sbr.rel (%p281) target = $region20
      $region19: #{spade_forward.3} parent=11 // pred_region
        _
      $region20: #{spade_forward.3} parent=11 // pred_fallthru
        _
      // Predicated region
      $region21: #{spade_forward.3} parent=11 // pred_check
        %p284 = pneg %p172
      $region22: #{spade_forward.3} parent=11 // pred_check_branch
        %286 = sbr.rel (%p284) target = $region24
      $region23: #{spade_forward.3} parent=11 // pred_region
        _
      $region24: #{spade_forward.3} parent=11 // pred_fallthru
        _
      // Predicated region
      $region25: #{spade_forward.3} parent=11 // pred_check
        %p287 = pneg %p193
      $region26: #{spade_forward.3} parent=11 // pred_check_branch
        %289 = sbr.rel (%p287) target = $region28
      $region27: #{spade_forward.3} parent=11 // pred_region
        _
      $region28: #{spade_forward.3} parent=11 // pred_fallthru
        _
      // Predicated region
      $region29: #{spade_forward.3} parent=11 // pred_check
        %p290 = pneg %p214
      $region30: #{spade_forward.3} parent=11 // pred_check_branch
        %292 = sbr.rel (%p290) target = $region32
      $region31: #{spade_forward.3} parent=11 // pred_region
        _
      $region32: #{spade_forward.3} parent=11 // pred_fallthru
        _
      // Predicated region
      $region33: #{spade_forward.3} parent=11 // pred_check
        %p293 = pneg %p235
      $region34: #{spade_forward.3} parent=11 // pred_check_branch
        %295 = sbr.rel (%p293) target = $region36
      $region35: #{spade_forward.3} parent=11 // pred_region
        _
      $region36: #{spade_forward.3} parent=11 // pred_fallthru
        _
    $region12: #{spade_forward.3} parent=5 // pred_fallthru
      _
    %p296 = scmp.lt.s32.totalorder %s15, 4
    // Predicated region
    $region37: #{spade_forward.3} parent=5 // pred_check
      %p297 = pneg %p296
    $region38: #{spade_forward.3} parent=5 // pred_check_branch
      %299 = sbr.rel (%p297) target = $region40
    $region39: #{spade_forward.3} parent=5 // pred_region
      // Predicated region
      $region41: #{spade_forward.3} parent=39 // pred_check
        %p300 = pneg %p49
      $region42: #{spade_forward.3} parent=39 // pred_check_branch
        %302 = sbr.rel (%p300) target = $region44
      $region43: #{spade_forward.3} parent=39 // pred_region
        %p303 = scmp.lt.s32.totalorder %s22, 1
        %s304 = scalar_select %p303, %s22, 1
        %p305 = scmp.lt.s32.totalorder %s23, 1
        %s306 = scalar_select %p305, %s23, 1
        %s307 = smul.addr %s306, 2
        %s308 = smul.addr %s304, 4
        %s309 = sadd.s32 %s307, %s308
        %s310 = smul.addr %s309, 4
        %s311 = scalar_lea.vmem %s0, %s310
      $region44: #{spade_forward.3} parent=39 // pred_fallthru
        _
      // Predicated region
      $region45: #{spade_forward.3} parent=39 // pred_check
        %p312 = pneg %p77
      $region46: #{spade_forward.3} parent=39 // pred_check_branch
        %314 = sbr.rel (%p312) target = $region48
      $region47: #{spade_forward.3} parent=39 // pred_region
        %p315 = scmp.lt.s32.totalorder %s22, 1
        %s316 = scalar_select %p315, %s22, 1
        %p317 = scmp.lt.s32.totalorder %s23, 1
        %s318 = scalar_select %p317, %s23, 1
        %s319 = smul.addr %s318, 2
        %s320 = smul.addr %s316, 4
        %s321 = sadd.s32 %s319, %s320
        %s322 = smul.addr %s321, 4
        %s323 = scalar_lea.vmem %s1, %s322
      $region48: #{spade_forward.3} parent=39 // pred_fallthru
        _
      // Predicated region
      $region49: #{spade_forward.3} parent=39 // pred_check
        %p324 = pneg %p103
      $region50: #{spade_forward.3} parent=39 // pred_check_branch
        %326 = sbr.rel (%p324) target = $region52
      $region51: #{spade_forward.3} parent=39 // pred_region
        %p327 = scmp.lt.s32.totalorder %s23, 1
        %s328 = scalar_select %p327, %s23, 1
        %s329 = smul.addr %s328, 2
        %s330 = scalar_lea.vmem %s2, %s329
      $region52: #{spade_forward.3} parent=39 // pred_fallthru
        _
    $region40: #{spade_forward.3} parent=5 // pred_fallthru
      _
    %p331 = scmp.le.s32.totalorder 1, %s15
    %p332 = scmp.lt.s32.totalorder %s15, 5
    %p333 = pnand %p331, %p332
    %p334 = pneg %p333
    // Predicated region
    $region53: #{spade_forward.3} parent=5 // pred_check
      _
    $region54: #{spade_forward.3} parent=5 // pred_check_branch
      %336 = sbr.rel (%p333) target = $region56
    $region55: #{spade_forward.3} parent=5 // pred_region
      %s337 = ssub.s32 %s15, 1
      %p338 = scmp.lt.s32.totalorder %s24, 1
      %s339 = scalar_select %p338, %s24, 1
      %p340 = scmp.lt.s32.totalorder %s25, 1
      %s341 = scalar_select %p340, %s25, 1
      %s342 = smul.addr %s341, 2
      %s343 = smul.addr %s339, 4
      %s344 = sadd.s32 %s342, %s343
      %s345 = smul.addr %s344, 4
      %s346 = scalar_lea.vmem %s0, %s345
      %p347 = pneg %p55
      %p348 = pneg %p52
      %p349 = scmp.lt.s32.totalorder %s24, 1
      %s350 = scalar_select %p349, %s24, 1
      %p351 = scmp.lt.s32.totalorder %s25, 1
      %s352 = scalar_select %p351, %s25, 1
      %s353 = smul.addr %s352, 2
      %s354 = smul.addr %s350, 4
      %s355 = sadd.s32 %s353, %s354
      %s356 = smul.addr %s355, 4
      %s357 = scalar_lea.vmem %s1, %s356
      %p358 = pneg %p83
      %p359 = pneg %p80
      %p360 = scmp.lt.s32.totalorder %s25, 1
      %s361 = scalar_select %p360, %s25, 1
      %s362 = smul.addr %s361, 2
      %s363 = scalar_lea.vmem %s2, %s362
      %p364 = pneg %p109
      %p365 = pneg %p106
      %p366 = pneg %p130
      %p367 = pneg %p127
      %p368 = pneg %p151
      %p369 = pneg %p148
      %p370 = pneg %p172
      %p371 = pneg %p169
      %p372 = pneg %p193
      %p373 = pneg %p190
      %p374 = pneg %p214
      %p375 = pneg %p211
      %p376 = pneg %p235
      %p377 = pneg %p232
      %p378 = pneg %p263
      %p379 = pneg %p260
      %p380 = scmp.lt.s32.totalorder %s24, 1
      %s381 = scalar_select %p380, %s24, 1
      %p382 = scmp.lt.s32.totalorder %s25, 1
      %s383 = scalar_select %p382, %s25, 1
      %s384 = smul.addr %s383, 2
      %s385 = smul.addr %s381, 4
      %s386 = sadd.s32 %s384, %s385
      %s387 = smul.addr %s386, 4
      %s388 = scalar_lea.vmem %s9, %s387
      %p389 = scmp.lt.s32.totalorder %s24, 1
      %s390 = scalar_select %p389, %s24, 1
      %p391 = scmp.lt.s32.totalorder %s25, 1
      %s392 = scalar_select %p391, %s25, 1
      %s393 = smul.addr %s392, 2
      %s394 = smul.addr %s390, 4
      %s395 = sadd.s32 %s393, %s394
      %s396 = smul.addr %s395, 4
      %s397 = scalar_lea.vmem %s0, %s396
      %p398 = scmp.lt.s32.totalorder %s24, 1
      %s399 = scalar_select %p398, %s24, 1
      %p400 = scmp.lt.s32.totalorder %s25, 1
      %s401 = scalar_select %p400, %s25, 1
      %s402 = smul.addr %s401, 2
      %s403 = smul.addr %s399, 4
      %s404 = sadd.s32 %s402, %s403
      %s405 = smul.addr %s404, 4
      %s406 = scalar_lea.vmem %s1, %s405
      %p407 = scmp.lt.s32.totalorder %s25, 1
      %s408 = scalar_select %p407, %s25, 1
      %s409 = smul.addr %s408, 2
      %s410 = scalar_lea.vmem %s2, %s409
      %p411 = scmp.lt.s32.totalorder %s24, 1
      %s412 = scalar_select %p411, %s24, 1
      %p413 = scmp.lt.s32.totalorder %s25, 1
      %s414 = scalar_select %p413, %s25, 1
      %s415 = smul.addr %s414, 2
      %s416 = smul.addr %s412, 4
      %s417 = sadd.s32 %s415, %s416
      %s418 = smul.addr %s417, 4
      %s419 = scalar_lea.vmem %s9, %s418
      %v421 = vld [vmem:[%s397] sm:$0xff]
      %vm422 = vcmask 1043456
      %vm423 = vcmask 424964
      %vm424 = vmor %vm423, %vm422
      %425 = vst.msk [vmem:[#allocation3] sm:$0xff] %vm424, %v421
      %427 = vrot.lane.b32.xlu0 %v421, 127
      %v428 = vpop.permute.xlu0 %427
      %v429 = vrot.slane %v428, 4
      %vm430 = vcmask 1039360
      %v431 = vsel %vm430, %v428, %v429
      %433 = vst.msk [vmem:[#allocation3 + $0x8] sm:$0xff] %vm424, %v431
      %434 = vrot.lane.b32.xlu0 %v421, 126
      %v435 = vpop.permute.xlu0 %434
      %v436 = vrot.slane %v435, 4
      %vm437 = vcmask 1031168
      %v438 = vsel %vm437, %v435, %v436
      %440 = vst.msk [vmem:[#allocation3 + $0x10] sm:$0xff] %vm424, %v438
      %441 = vrot.lane.b32.xlu0 %v421, 110
      %v442 = vpop.permute.xlu0 %441
      %v443 = vrot.slane %v442, 4
      %vm444 = vcmask 900096
      %v445 = vsel %vm444, %v442, %v443
      %447 = vst.msk [vmem:[#allocation3 + $0x18] sm:$0xff] %vm424, %v445
      %448 = vrot.lane.b32.xlu0 %v421, 109
      %v449 = vpop.permute.xlu0 %448
      %v450 = vrot.slane %v449, 4
      %vm451 = vcmask 891904
      %v452 = vsel %vm451, %v449, %v450
      %454 = vst.msk [vmem:[#allocation3 + $0x20] sm:$0xff] %vm424, %v452
      %455 = vrot.lane.b32.xlu0 %v421, 108
      %v456 = vpop.permute.xlu0 %455
      %v457 = vrot.slane %v456, 4
      %vm458 = vcmask 883712
      %v459 = vsel %vm458, %v456, %v457
      %461 = vst.msk [vmem:[#allocation3 + $0x28] sm:$0xff] %vm424, %v459
      %462 = vrot.lane.b32.xlu0 %v421, 92
      %v463 = vpop.permute.xlu0 %462
      %v464 = vrot.slane %v463, 4
      %vm465 = vcmask 752640
      %v466 = vsel %vm465, %v463, %v464
      %468 = vst.msk [vmem:[#allocation3 + $0x30] sm:$0xff] %vm424, %v466
      %469 = vrot.lane.b32.xlu0 %v421, 91
      %v470 = vpop.permute.xlu0 %469
      %v471 = vrot.slane %v470, 4
      %vm472 = vcmask 744448
      %v473 = vsel %vm472, %v470, %v471
      %475 = vst.msk [vmem:[#allocation3 + $0x38] sm:$0xff] %vm424, %v473
      %476 = vrot.lane.b32.xlu0 %v421, 90
      %v477 = vpop.permute.xlu0 %476
      %v478 = vrot.slane %v477, 4
      %vm479 = vcmask 736256
      %v480 = vsel %vm479, %v477, %v478
      %482 = vst.msk [vmem:[#allocation3 + $0x40] sm:$0xff] %vm424, %v480
      %v483 = vld [vmem:[%s3] sm:$0xf]
      %v484 = vld [vmem:[%s3 + $0x4] sm:$0xf]
      %v485 = vld [vmem:[%s3 + $0x8] sm:$0xf]
      %v486 = vld [vmem:[%s3 + $0xc] sm:$0xf]
      %v487 = vld [vmem:[#allocation3] sm:$0xff]
      %v488 = vld [vmem:[#allocation3 + $0x8] sm:$0xff]
      %v489 = vld [vmem:[#allocation3 + $0x10] sm:$0xff]
      %v490 = vld [vmem:[#allocation3 + $0x18] sm:$0xff]
      %v491 = vld [vmem:[#allocation3 + $0x20] sm:$0xff]
      %v492 = vld [vmem:[#allocation3 + $0x28] sm:$0xff]
      %v493 = vld [vmem:[#allocation3 + $0x30] sm:$0xff]
      %v494 = vld [vmem:[#allocation3 + $0x38] sm:$0xff]
      %v495 = vld [vmem:[#allocation3 + $0x40] sm:$0xff]
      %v496 = vld [vmem:[%s4] sm:$0xff]
      %v497 = vld [vmem:[%s4 + $0x8] sm:$0xff]
      %v498 = vld [vmem:[%s4 + $0x10] sm:$0xff]
      %v499 = vld [vmem:[%s4 + $0x18] sm:$0xff]
      %501 = vset.pattern.permute.xlu0 0
      %502 = vperm.xlu0 %501, %v496
      %v503 = vpop.permute.xlu0 %502
      %506 = vset.pattern.permute.xlu0 0
      %507 = vperm.xlu0 %506, %v497
      %v508 = vpop.permute.xlu0 %507
      %511 = vset.pattern.permute.xlu0 0
      %512 = vperm.xlu0 %511, %v498
      %v513 = vpop.permute.xlu0 %512
      %516 = vset.pattern.permute.xlu0 0
      %517 = vperm.xlu0 %516, %v499
      %v518 = vpop.permute.xlu0 %517
      %v524 = vunpack.c.l.b16 %v483
      %v525 = vunpack.c.l.b16 %v484
      %v526 = vunpack.c.l.b16 %v485
      %v527 = vunpack.c.l.b16 %v486
      %v528 = vpack.c.b16 %v525, %v524
      %v529 = vpack.c.b16 %v527, %v526
      %v539 = vunpack.c.l.b16 %v487
      %v540 = vunpack.c.h.b16 %v487
      %v541 = vunpack.c.l.b16 %v488
      %v542 = vunpack.c.h.b16 %v488
      %v543 = vunpack.c.l.b16 %v489
      %v544 = vunpack.c.h.b16 %v489
      %v545 = vunpack.c.l.b16 %v490
      %v546 = vunpack.c.h.b16 %v490
      %v547 = vunpack.c.l.b16 %v491
      %v548 = vunpack.c.h.b16 %v491
      %v549 = vunpack.c.l.b16 %v492
      %v550 = vunpack.c.h.b16 %v492
      %v551 = vunpack.c.l.b16 %v493
      %v552 = vunpack.c.h.b16 %v493
      %v553 = vunpack.c.l.b16 %v494
      %v554 = vunpack.c.h.b16 %v494
      %v555 = vunpack.c.l.b16 %v495
      %v556 = vunpack.c.h.b16 %v495
      %v557 = vpack.c.b16 %v541, %v539
      %v558 = vpack.c.b16 %v542, %v540
      %v559 = vpack.c.b16 %v545, %v543
      %v560 = vpack.c.b16 %v546, %v544
      %v561 = vpack.c.b16 %v549, %v547
      %v562 = vpack.c.b16 %v550, %v548
      %v563 = vpack.c.b16 %v553, %v551
      %v564 = vpack.c.b16 %v554, %v552
      %v565 = vpack.c.b16 %v555, %v555
      %v566 = vpack.c.b16 %v556, %v556
      %vm575 = vcmask 588800
      %v577 = vsel %vm575, %v528, 0
      %v580 = vsel %vm575, %v529, 0
      %v583 = vsel %vm422, %v565, 0
      %v586 = vsel %vm422, %v566, 0
      %588 = vmatpush.bf16.msra.mxu0 0
      %589 = vmatpush.bf16.msra.mxu0 0
      %590 = vmatpush.bf16.msra.mxu0 0
      %591 = vmatpush.bf16.msra.mxu0 %v583
      %592 = vmatpush.bf16.msra.mxu0 %v563
      %593 = vmatpush.bf16.msra.mxu0 %v561
      %594 = vmatpush.bf16.msra.mxu0 %v559
      %595 = vmatpush.bf16.msra.mxu0 %v557
      %596 = vmatmul.bf16.gmra.mxu0 %v577
      %v597 = vpop.f32.mrf.mxu0
      %v598 = vadd.f32 %v503, %v597
      %v599 = vpop.f32.mrf.mxu0
      %v600 = vadd.f32 %v508, %v599
      %601 = vmatmul.bf16.gmra.mxu0 %v580
      %v602 = vpop.f32.mrf.mxu0
      %v603 = vadd.f32 %v513, %v602
      %v604 = vpop.f32.mrf.mxu0
      %v605 = vadd.f32 %v518, %v604
      %606 = vdwg.mxu0
      %607 = vmatpush.bf16.msra.mxu0 0
      %608 = vmatpush.bf16.msra.mxu0 0
      %609 = vmatpush.bf16.msra.mxu0 0
      %610 = vmatpush.bf16.msra.mxu0 %v586
      %611 = vmatpush.bf16.msra.mxu0 %v564
      %612 = vmatpush.bf16.msra.mxu0 %v562
      %613 = vmatpush.bf16.msra.mxu0 %v560
      %614 = vmatpush.bf16.msra.mxu0 %v558
      %615 = vmatmul.bf16.gmra.mxu0 %v577
      %v616 = vpop.f32.mrf.mxu0
      %v617 = vadd.f32 %v503, %v616
      %v618 = vpop.f32.mrf.mxu0
      %v619 = vadd.f32 %v508, %v618
      %620 = vmatmul.bf16.gmra.mxu0 %v580
      %v621 = vpop.f32.mrf.mxu0
      %v622 = vadd.f32 %v513, %v621
      %v623 = vpop.f32.mrf.mxu0
      %v624 = vadd.f32 %v518, %v623
      %625 = vdwg.mxu0
      %v626 = vld [vmem:[%s410] sm:$0x3]
      %v628 = vperm.slane %v626, 0
      %v629 = vperm.slane %v626, 1
      %v632 = vmul.f32 %v598, %v628
      %v633 = vmul.f32 %v617, %v629
      %v634 = vmul.f32 %v600, %v628
      %v635 = vmul.f32 %v619, %v629
      %v636 = vmul.f32 %v603, %v628
      %v637 = vmul.f32 %v622, %v629
      %v638 = vmul.f32 %v605, %v628
      %v639 = vmul.f32 %v624, %v629
      %640 = vst [vmem:[#allocation2] sm:$0xf] 0
      %641 = vst [vmem:[#allocation2 + $0xc] sm:$0xf] 0
      %642 = vst [vmem:[#allocation2 + $0x18] sm:$0xf] 0
      %643 = vst [vmem:[#allocation2 + $0x24] sm:$0xf] 0
      %vm644 = vcmask 1043872
      %645 = vst.msk [vmem:[#allocation2 + $0x8] sm:$0xf] %vm644, 0
      %646 = vst.msk [vmem:[#allocation2 + $0x14] sm:$0xf] %vm644, 0
      %647 = vst.msk [vmem:[#allocation2 + $0x20] sm:$0xf] %vm644, 0
      %648 = vst.msk [vmem:[#allocation2 + $0x2c] sm:$0xf] %vm644, 0
      %v649 = vpack.c.bf16 %v633, %v632
      %v650 = vpack.c.bf16 %v635, %v634
      %v651 = vpack.c.bf16 %v637, %v636
      %v652 = vpack.c.bf16 %v639, %v638
      %653 = vst.msk [vmem:[#allocation2 + $0x4] sm:$0xff] %vm424, %v649
      %654 = vst.msk [vmem:[#allocation2 + $0x10] sm:$0xff] %vm424, %v650
      %655 = vst.msk [vmem:[#allocation2 + $0x1c] sm:$0xff] %vm424, %v651
      %656 = vst.msk [vmem:[#allocation2 + $0x28] sm:$0xff] %vm424, %v652
      %v657 = vld [vmem:[%s5] sm:$0xf]
      %v658 = vld [vmem:[%s5 + $0xc] sm:$0xf]
      %v659 = vld [vmem:[#allocation2] sm:$0xff]
      %v660 = vld [vmem:[#allocation2 + $0x8] sm:$0xf]
      %v661 = vld [vmem:[#allocation2 + $0xc] sm:$0xff]
      %v662 = vld [vmem:[#allocation2 + $0x14] sm:$0xf]
      %v663 = vld [vmem:[#allocation2 + $0x18] sm:$0xff]
      %v664 = vld [vmem:[#allocation2 + $0x20] sm:$0xf]
      %v665 = vld [vmem:[#allocation2 + $0x24] sm:$0xff]
      %v666 = vld [vmem:[#allocation2 + $0x2c] sm:$0xf]
      %v667 = vld [vmem:[#allocation2 + $0x4] sm:$0xff]
      %v668 = vld [vmem:[#allocation2 + $0x10] sm:$0xff]
      %v669 = vld [vmem:[#allocation2 + $0x1c] sm:$0xff]
      %v670 = vld [vmem:[#allocation2 + $0x28] sm:$0xff]
      %v673 = vunpack.c.l.b16 %v657
      %v674 = vunpack.c.l.b16 %v658
      %v675 = vpack.c.b16 %v674, %v673
      %676 = vrot.lane.b32.xlu0 %v675, 96
      %v677 = vpop.permute.xlu0 %676
      %v682 = vunpack.c.l.b16 %v667
      %v683 = vunpack.c.h.b16 %v667
      %v684 = vunpack.c.l.b16 %v668
      %v685 = vunpack.c.h.b16 %v668
      %v686 = vunpack.c.l.b16 %v669
      %v687 = vunpack.c.h.b16 %v669
      %v688 = vunpack.c.l.b16 %v670
      %v689 = vunpack.c.h.b16 %v670
      %v690 = vpack.c.b16 %v684, %v682
      %v691 = vpack.c.b16 %v685, %v683
      %v692 = vpack.c.b16 %v688, %v686
      %v693 = vpack.c.b16 %v689, %v687
      %vm698 = vcmask 261120
      %v700 = vsel %vm698, %v677, 0
      %702 = vmatpush.bf16.msra.mxu0 0
      %703 = vmatpush.bf16.msra.mxu0 0
      %704 = vmatpush.bf16.msra.mxu0 0
      %705 = vmatpush.bf16.msra.mxu0 0
      %706 = vmatpush.bf16.msra.mxu0 0
      %707 = vmatpush.bf16.msra.mxu0 0
      %708 = vmatpush.bf16.msra.mxu0 %v692
      %709 = vmatpush.bf16.msra.mxu0 %v690
      %710 = vmatmul.bf16.gmra.mxu0 %v700
      %v711 = vpop.f32.mrf.mxu0
      %v712 = vadd.f32 0.0, %v711
      %v713 = vpop.f32.mrf.mxu0
      %v714 = vadd.f32 0.0, %v713
      %715 = vdwg.mxu0
      %716 = vmatpush.bf16.msra.mxu0 0
      %717 = vmatpush.bf16.msra.mxu0 0
      %718 = vmatpush.bf16.msra.mxu0 0
      %719 = vmatpush.bf16.msra.mxu0 0
      %720 = vmatpush.bf16.msra.mxu0 0
      %721 = vmatpush.bf16.msra.mxu0 0
      %722 = vmatpush.bf16.msra.mxu0 %v693
      %723 = vmatpush.bf16.msra.mxu0 %v691
      %724 = vmatmul.bf16.gmra.mxu0 %v700
      %v725 = vpop.f32.mrf.mxu0
      %v726 = vadd.f32 0.0, %v725
      %v727 = vpop.f32.mrf.mxu0
      %v728 = vadd.f32 0.0, %v727
      %729 = vdwg.mxu0
      %v738 = vunpack.c.l.b16 %v659
      %v739 = vunpack.c.h.b16 %v659
      %v740 = vunpack.c.l.b16 %v660
      %v741 = vunpack.c.l.b16 %v661
      %v742 = vunpack.c.h.b16 %v661
      %v743 = vunpack.c.l.b16 %v662
      %v744 = vunpack.c.l.b16 %v663
      %v745 = vunpack.c.h.b16 %v663
      %v746 = vunpack.c.l.b16 %v664
      %v747 = vunpack.c.l.b16 %v665
      %v748 = vunpack.c.h.b16 %v665
      %v749 = vunpack.c.l.b16 %v666
      %v750 = vpack.c.b16 %v741, %v738
      %v751 = vpack.c.b16 %v742, %v739
      %v752 = vpack.c.b16 %v743, %v740
      %v753 = vpack.c.b16 %v747, %v744
      %v754 = vpack.c.b16 %v748, %v745
      %v755 = vpack.c.b16 %v749, %v746
      %756 = vrot.lane.b32.xlu0 %v750, 1
      %v757 = vpop.permute.xlu0 %756
      %758 = vrot.lane.b32.xlu0 %v751, 1
      %v759 = vpop.permute.xlu0 %758
      %760 = vrot.lane.b32.xlu0 %v752, 1
      %v761 = vpop.permute.xlu0 %760
      %762 = vrot.lane.b32.xlu0 %v753, 1
      %v763 = vpop.permute.xlu0 %762
      %764 = vrot.lane.b32.xlu0 %v754, 1
      %v765 = vpop.permute.xlu0 %764
      %766 = vrot.lane.b32.xlu0 %v755, 1
      %v767 = vpop.permute.xlu0 %766
      %vm768 = vcmask 7168
      %v769 = vsel %vm768, %v757, %v759
      %v770 = vsel %vm768, %v759, %v761
      %v771 = vsel %vm768, %v763, %v765
      %v772 = vsel %vm768, %v765, %v767
      %v778 = vsel %vm698, %v675, 0
      %780 = vmatpush.bf16.msra.mxu0 0
      %781 = vmatpush.bf16.msra.mxu0 0
      %782 = vmatpush.bf16.msra.mxu0 0
      %783 = vmatpush.bf16.msra.mxu0 0
      %784 = vmatpush.bf16.msra.mxu0 0
      %785 = vmatpush.bf16.msra.mxu0 0
      %786 = vmatpush.bf16.msra.mxu0 %v771
      %787 = vmatpush.bf16.msra.mxu0 %v769
      %788 = vmatmul.bf16.gmra.mxu0 %v778
      %v789 = vpop.f32.mrf.mxu0
      %v790 = vadd.f32 %v712, %v789
      %v791 = vpop.f32.mrf.mxu0
      %v792 = vadd.f32 %v714, %v791
      %793 = vdwg.mxu0
      %794 = vmatpush.bf16.msra.mxu0 0
      %795 = vmatpush.bf16.msra.mxu0 0
      %796 = vmatpush.bf16.msra.mxu0 0
      %797 = vmatpush.bf16.msra.mxu0 0
      %798 = vmatpush.bf16.msra.mxu0 0
      %799 = vmatpush.bf16.msra.mxu0 0
      %800 = vmatpush.bf16.msra.mxu0 %v772
      %801 = vmatpush.bf16.msra.mxu0 %v770
      %802 = vmatmul.bf16.gmra.mxu0 %v778
      %v803 = vpop.f32.mrf.mxu0
      %v804 = vadd.f32 %v726, %v803
      %v805 = vpop.f32.mrf.mxu0
      %v806 = vadd.f32 %v728, %v805
      %807 = vdwg.mxu0
      %808 = vrot.lane.b32.xlu0 %v675, 64
      %v809 = vpop.permute.xlu0 %808
      %810 = vrot.lane.b32.xlu0 %v690, 127
      %v811 = vpop.permute.xlu0 %810
      %812 = vrot.lane.b32.xlu0 %v691, 127
      %v813 = vpop.permute.xlu0 %812
      %814 = vrot.lane.b32.xlu0 %v692, 127
      %v815 = vpop.permute.xlu0 %814
      %816 = vrot.lane.b32.xlu0 %v693, 127
      %v817 = vpop.permute.xlu0 %816
      %v818 = vsel %vm430, %v811, %v813
      %v819 = vsel %vm430, %v815, %v817
      %v825 = vsel %vm698, %v809, 0
      %827 = vmatpush.bf16.msra.mxu0 0
      %828 = vmatpush.bf16.msra.mxu0 0
      %829 = vmatpush.bf16.msra.mxu0 0
      %830 = vmatpush.bf16.msra.mxu0 0
      %831 = vmatpush.bf16.msra.mxu0 0
      %832 = vmatpush.bf16.msra.mxu0 0
      %833 = vmatpush.bf16.msra.mxu0 %v819
      %834 = vmatpush.bf16.msra.mxu0 %v818
      %835 = vmatmul.bf16.gmra.mxu0 %v825
      %v836 = vpop.f32.mrf.mxu0
      %v837 = vadd.f32 0.0, %v836
      %v838 = vpop.f32.mrf.mxu0
      %v839 = vadd.f32 0.0, %v838
      %840 = vdwg.mxu0
      %841 = vmatpush.bf16.msra.mxu0 0
      %842 = vmatpush.bf16.msra.mxu0 0
      %843 = vmatpush.bf16.msra.mxu0 0
      %844 = vmatpush.bf16.msra.mxu0 0
      %845 = vmatpush.bf16.msra.mxu0 0
      %846 = vmatpush.bf16.msra.mxu0 0
      %847 = vmatpush.bf16.msra.mxu0 %v817
      %848 = vmatpush.bf16.msra.mxu0 %v813
      %849 = vmatmul.bf16.gmra.mxu0 %v825
      %v850 = vpop.f32.mrf.mxu0
      %v851 = vadd.f32 0.0, %v850
      %v852 = vpop.f32.mrf.mxu0
      %v853 = vadd.f32 0.0, %v852
      %854 = vdwg.mxu0
      %v855 = vadd.f32 %v790, %v837
      %v856 = vadd.f32 %v804, %v851
      %v857 = vadd.f32 %v792, %v839
      %v858 = vadd.f32 %v806, %v853
      %859 = vrot.lane.b32.xlu0 %v675, 32
      %v860 = vpop.permute.xlu0 %859
      %861 = vrot.lane.b32.xlu0 %v690, 111
      %v862 = vpop.permute.xlu0 %861
      %863 = vrot.lane.b32.xlu0 %v691, 111
      %v864 = vpop.permute.xlu0 %863
      %865 = vrot.lane.b32.xlu0 %v692, 111
      %v866 = vpop.permute.xlu0 %865
      %867 = vrot.lane.b32.xlu0 %v693, 111
      %v868 = vpop.permute.xlu0 %867
      %vm869 = vcmask 908288
      %v870 = vsel %vm869, %v862, %v864
      %v871 = vsel %vm869, %v866, %v868
      %v877 = vsel %vm698, %v860, 0
      %879 = vmatpush.bf16.msra.mxu0 0
      %880 = vmatpush.bf16.msra.mxu0 0
      %881 = vmatpush.bf16.msra.mxu0 0
      %882 = vmatpush.bf16.msra.mxu0 0
      %883 = vmatpush.bf16.msra.mxu0 0
      %884 = vmatpush.bf16.msra.mxu0 0
      %885 = vmatpush.bf16.msra.mxu0 %v871
      %886 = vmatpush.bf16.msra.mxu0 %v870
      %887 = vmatmul.bf16.gmra.mxu0 %v877
      %v888 = vpop.f32.mrf.mxu0
      %v889 = vadd.f32 0.0, %v888
      %v890 = vpop.f32.mrf.mxu0
      %v891 = vadd.f32 0.0, %v890
      %892 = vdwg.mxu0
      %893 = vmatpush.bf16.msra.mxu0 0
      %894 = vmatpush.bf16.msra.mxu0 0
      %895 = vmatpush.bf16.msra.mxu0 0
      %896 = vmatpush.bf16.msra.mxu0 0
      %897 = vmatpush.bf16.msra.mxu0 0
      %898 = vmatpush.bf16.msra.mxu0 0
      %899 = vmatpush.bf16.msra.mxu0 %v868
      %900 = vmatpush.bf16.msra.mxu0 %v864
      %901 = vmatmul.bf16.gmra.mxu0 %v877
      %v902 = vpop.f32.mrf.mxu0
      %v903 = vadd.f32 0.0, %v902
      %v904 = vpop.f32.mrf.mxu0
      %v905 = vadd.f32 0.0, %v904
      %906 = vdwg.mxu0
      %v907 = vadd.f32 %v855, %v889
      %v908 = vadd.f32 %v856, %v903
      %v909 = vadd.f32 %v857, %v891
      %v910 = vadd.f32 %v858, %v905
      %v911 = vld [vmem:[%s5 + $0x4] sm:$0xf]
      %v912 = vld [vmem:[%s5 + $0x10] sm:$0xf]
      %v915 = vunpack.c.l.b16 %v911
      %v916 = vunpack.c.l.b16 %v912
      %v917 = vpack.c.b16 %v916, %v915
      %918 = vrot.lane.b32.xlu0 %v690, 110
      %v919 = vpop.permute.xlu0 %918
      %920 = vrot.lane.b32.xlu0 %v691, 110
      %v921 = vpop.permute.xlu0 %920
      %922 = vrot.lane.b32.xlu0 %v692, 110
      %v923 = vpop.permute.xlu0 %922
      %924 = vrot.lane.b32.xlu0 %v693, 110
      %v925 = vpop.permute.xlu0 %924
      %v926 = vsel %vm444, %v919, %v921
      %v927 = vsel %vm444, %v923, %v925
      %v933 = vsel %vm698, %v917, 0
      %935 = vmatpush.bf16.msra.mxu0 0
      %936 = vmatpush.bf16.msra.mxu0 0
      %937 = vmatpush.bf16.msra.mxu0 0
      %938 = vmatpush.bf16.msra.mxu0 0
      %939 = vmatpush.bf16.msra.mxu0 0
      %940 = vmatpush.bf16.msra.mxu0 0
      %941 = vmatpush.bf16.msra.mxu0 %v927
      %942 = vmatpush.bf16.msra.mxu0 %v926
      %943 = vmatmul.bf16.gmra.mxu0 %v933
      %v944 = vpop.f32.mrf.mxu0
      %v945 = vadd.f32 0.0, %v944
      %v946 = vpop.f32.mrf.mxu0
      %v947 = vadd.f32 0.0, %v946
      %948 = vdwg.mxu0
      %949 = vmatpush.bf16.msra.mxu0 0
      %950 = vmatpush.bf16.msra.mxu0 0
      %951 = vmatpush.bf16.msra.mxu0 0
      %952 = vmatpush.bf16.msra.mxu0 0
      %953 = vmatpush.bf16.msra.mxu0 0
      %954 = vmatpush.bf16.msra.mxu0 0
      %955 = vmatpush.bf16.msra.mxu0 %v925
      %956 = vmatpush.bf16.msra.mxu0 %v921
      %957 = vmatmul.bf16.gmra.mxu0 %v933
      %v958 = vpop.f32.mrf.mxu0
      %v959 = vadd.f32 0.0, %v958
      %v960 = vpop.f32.mrf.mxu0
      %v961 = vadd.f32 0.0, %v960
      %962 = vdwg.mxu0
      %v963 = vadd.f32 %v907, %v945
      %v964 = vadd.f32 %v908, %v959
      %v965 = vadd.f32 %v909, %v947
      %v966 = vadd.f32 %v910, %v961
      %967 = vrot.lane.b32.xlu0 %v917, 96
      %v968 = vpop.permute.xlu0 %967
      %969 = vrot.lane.b32.xlu0 %v690, 109
      %v970 = vpop.permute.xlu0 %969
      %971 = vrot.lane.b32.xlu0 %v691, 109
      %v972 = vpop.permute.xlu0 %971
      %973 = vrot.lane.b32.xlu0 %v692, 109
      %v974 = vpop.permute.xlu0 %973
      %975 = vrot.lane.b32.xlu0 %v693, 109
      %v976 = vpop.permute.xlu0 %975
      %v977 = vsel %vm451, %v970, %v972
      %v978 = vsel %vm451, %v974, %v976
      %v984 = vsel %vm698, %v968, 0
      %986 = vmatpush.bf16.msra.mxu0 0
      %987 = vmatpush.bf16.msra.mxu0 0
      %988 = vmatpush.bf16.msra.mxu0 0
      %989 = vmatpush.bf16.msra.mxu0 0
      %990 = vmatpush.bf16.msra.mxu0 0
      %991 = vmatpush.bf16.msra.mxu0 0
      %992 = vmatpush.bf16.msra.mxu0 %v978
      %993 = vmatpush.bf16.msra.mxu0 %v977
      %994 = vmatmul.bf16.gmra.mxu0 %v984
      %v995 = vpop.f32.mrf.mxu0
      %v996 = vadd.f32 0.0, %v995
      %v997 = vpop.f32.mrf.mxu0
      %v998 = vadd.f32 0.0, %v997
      %999 = vdwg.mxu0
      %1000 = vmatpush.bf16.msra.mxu0 0
      %1001 = vmatpush.bf16.msra.mxu0 0
      %1002 = vmatpush.bf16.msra.mxu0 0
      %1003 = vmatpush.bf16.msra.mxu0 0
      %1004 = vmatpush.bf16.msra.mxu0 0
      %1005 = vmatpush.bf16.msra.mxu0 0
      %1006 = vmatpush.bf16.msra.mxu0 %v976
      %1007 = vmatpush.bf16.msra.mxu0 %v972
      %1008 = vmatmul.bf16.gmra.mxu0 %v984
      %v1009 = vpop.f32.mrf.mxu0
      %v1010 = vadd.f32 0.0, %v1009
      %v1011 = vpop.f32.mrf.mxu0
      %v1012 = vadd.f32 0.0, %v1011
      %1013 = vdwg.mxu0
      %v1014 = vadd.f32 %v963, %v996
      %v1015 = vadd.f32 %v964, %v1010
      %v1016 = vadd.f32 %v965, %v998
      %v1017 = vadd.f32 %v966, %v1012
      %1018 = vrot.lane.b32.xlu0 %v917, 64
      %v1019 = vpop.permute.xlu0 %1018
      %1020 = vrot.lane.b32.xlu0 %v690, 93
      %v1021 = vpop.permute.xlu0 %1020
      %1022 = vrot.lane.b32.xlu0 %v691, 93
      %v1023 = vpop.permute.xlu0 %1022
      %1024 = vrot.lane.b32.xlu0 %v692, 93
      %v1025 = vpop.permute.xlu0 %1024
      %1026 = vrot.lane.b32.xlu0 %v693, 93
      %v1027 = vpop.permute.xlu0 %1026
      %vm1028 = vcmask 760832
      %v1029 = vsel %vm1028, %v1021, %v1023
      %v1030 = vsel %vm1028, %v1025, %v1027
      %v1036 = vsel %vm698, %v1019, 0
      %1038 = vmatpush.bf16.msra.mxu0 0
      %1039 = vmatpush.bf16.msra.mxu0 0
      %1040 = vmatpush.bf16.msra.mxu0 0
      %1041 = vmatpush.bf16.msra.mxu0 0
      %1042 = vmatpush.bf16.msra.mxu0 0
      %1043 = vmatpush.bf16.msra.mxu0 0
      %1044 = vmatpush.bf16.msra.mxu0 %v1030
      %1045 = vmatpush.bf16.msra.mxu0 %v1029
      %1046 = vmatmul.bf16.gmra.mxu0 %v1036
      %v1047 = vpop.f32.mrf.mxu0
      %v1048 = vadd.f32 0.0, %v1047
      %v1049 = vpop.f32.mrf.mxu0
      %v1050 = vadd.f32 0.0, %v1049
      %1051 = vdwg.mxu0
      %1052 = vmatpush.bf16.msra.mxu0 0
      %1053 = vmatpush.bf16.msra.mxu0 0
      %1054 = vmatpush.bf16.msra.mxu0 0
      %1055 = vmatpush.bf16.msra.mxu0 0
      %1056 = vmatpush.bf16.msra.mxu0 0
      %1057 = vmatpush.bf16.msra.mxu0 0
      %1058 = vmatpush.bf16.msra.mxu0 %v1027
      %1059 = vmatpush.bf16.msra.mxu0 %v1023
      %1060 = vmatmul.bf16.gmra.mxu0 %v1036
      %v1061 = vpop.f32.mrf.mxu0
      %v1062 = vadd.f32 0.0, %v1061
      %v1063 = vpop.f32.mrf.mxu0
      %v1064 = vadd.f32 0.0, %v1063
      %1065 = vdwg.mxu0
      %v1066 = vadd.f32 %v1014, %v1048
      %v1067 = vadd.f32 %v1015, %v1062
      %v1068 = vadd.f32 %v1016, %v1050
      %v1069 = vadd.f32 %v1017, %v1064
      %1070 = vrot.lane.b32.xlu0 %v917, 32
      %v1071 = vpop.permute.xlu0 %1070
      %1072 = vrot.lane.b32.xlu0 %v690, 92
      %v1073 = vpop.permute.xlu0 %1072
      %1074 = vrot.lane.b32.xlu0 %v691, 92
      %v1075 = vpop.permute.xlu0 %1074
      %1076 = vrot.lane.b32.xlu0 %v692, 92
      %v1077 = vpop.permute.xlu0 %1076
      %1078 = vrot.lane.b32.xlu0 %v693, 92
      %v1079 = vpop.permute.xlu0 %1078
      %v1080 = vsel %vm465, %v1073, %v1075
      %v1081 = vsel %vm465, %v1077, %v1079
      %v1087 = vsel %vm698, %v1071, 0
      %1089 = vmatpush.bf16.msra.mxu0 0
      %1090 = vmatpush.bf16.msra.mxu0 0
      %1091 = vmatpush.bf16.msra.mxu0 0
      %1092 = vmatpush.bf16.msra.mxu0 0
      %1093 = vmatpush.bf16.msra.mxu0 0
      %1094 = vmatpush.bf16.msra.mxu0 0
      %1095 = vmatpush.bf16.msra.mxu0 %v1081
      %1096 = vmatpush.bf16.msra.mxu0 %v1080
      %1097 = vmatmul.bf16.gmra.mxu0 %v1087
      %v1098 = vpop.f32.mrf.mxu0
      %v1099 = vadd.f32 0.0, %v1098
      %v1100 = vpop.f32.mrf.mxu0
      %v1101 = vadd.f32 0.0, %v1100
      %1102 = vdwg.mxu0
      %1103 = vmatpush.bf16.msra.mxu0 0
      %1104 = vmatpush.bf16.msra.mxu0 0
      %1105 = vmatpush.bf16.msra.mxu0 0
      %1106 = vmatpush.bf16.msra.mxu0 0
      %1107 = vmatpush.bf16.msra.mxu0 0
      %1108 = vmatpush.bf16.msra.mxu0 0
      %1109 = vmatpush.bf16.msra.mxu0 %v1079
      %1110 = vmatpush.bf16.msra.mxu0 %v1075
      %1111 = vmatmul.bf16.gmra.mxu0 %v1087
      %v1112 = vpop.f32.mrf.mxu0
      %v1113 = vadd.f32 0.0, %v1112
      %v1114 = vpop.f32.mrf.mxu0
      %v1115 = vadd.f32 0.0, %v1114
      %1116 = vdwg.mxu0
      %v1117 = vadd.f32 %v1066, %v1099
      %v1118 = vadd.f32 %v1067, %v1113
      %v1119 = vadd.f32 %v1068, %v1101
      %v1120 = vadd.f32 %v1069, %v1115
      %v1121 = vld [vmem:[%s5 + $0x8] sm:$0xf]
      %v1122 = vld [vmem:[%s5 + $0x14] sm:$0xf]
      %v1125 = vunpack.c.l.b16 %v1121
      %v1126 = vunpack.c.l.b16 %v1122
      %v1127 = vpack.c.b16 %v1126, %v1125
      %1128 = vrot.lane.b32.xlu0 %v690, 91
      %v1129 = vpop.permute.xlu0 %1128
      %1130 = vrot.lane.b32.xlu0 %v691, 91
      %v1131 = vpop.permute.xlu0 %1130
      %1132 = vrot.lane.b32.xlu0 %v692, 91
      %v1133 = vpop.permute.xlu0 %1132
      %1134 = vrot.lane.b32.xlu0 %v693, 91
      %v1135 = vpop.permute.xlu0 %1134
      %v1136 = vsel %vm472, %v1129, %v1131
      %v1137 = vsel %vm472, %v1133, %v1135
      %v1143 = vsel %vm698, %v1127, 0
      %1145 = vmatpush.bf16.msra.mxu0 0
      %1146 = vmatpush.bf16.msra.mxu0 0
      %1147 = vmatpush.bf16.msra.mxu0 0
      %1148 = vmatpush.bf16.msra.mxu0 0
      %1149 = vmatpush.bf16.msra.mxu0 0
      %1150 = vmatpush.bf16.msra.mxu0 0
      %1151 = vmatpush.bf16.msra.mxu0 %v1137
      %1152 = vmatpush.bf16.msra.mxu0 %v1136
      %1153 = vmatmul.bf16.gmra.mxu0 %v1143
      %v1154 = vpop.f32.mrf.mxu0
      %v1155 = vadd.f32 0.0, %v1154
      %v1156 = vpop.f32.mrf.mxu0
      %v1157 = vadd.f32 0.0, %v1156
      %1158 = vdwg.mxu0
      %1159 = vmatpush.bf16.msra.mxu0 0
      %1160 = vmatpush.bf16.msra.mxu0 0
      %1161 = vmatpush.bf16.msra.mxu0 0
      %1162 = vmatpush.bf16.msra.mxu0 0
      %1163 = vmatpush.bf16.msra.mxu0 0
      %1164 = vmatpush.bf16.msra.mxu0 0
      %1165 = vmatpush.bf16.msra.mxu0 %v1135
      %1166 = vmatpush.bf16.msra.mxu0 %v1131
      %1167 = vmatmul.bf16.gmra.mxu0 %v1143
      %v1168 = vpop.f32.mrf.mxu0
      %v1169 = vadd.f32 0.0, %v1168
      %v1170 = vpop.f32.mrf.mxu0
      %v1171 = vadd.f32 0.0, %v1170
      %1172 = vdwg.mxu0
      %v1173 = vadd.f32 %v1117, %v1155
      %v1174 = vadd.f32 %v1118, %v1169
      %v1175 = vadd.f32 %v1119, %v1157
      %v1176 = vadd.f32 %v1120, %v1171
      %v1177 = vld [vmem:[%s6] sm:$0xff]
      %v1178 = vld [vmem:[%s6 + $0x8] sm:$0xff]
      %1180 = vset.pattern.permute.xlu0 0
      %1181 = vperm.xlu0 %1180, %v1177
      %v1182 = vpop.permute.xlu0 %1181
      %1185 = vset.pattern.permute.xlu0 0
      %1186 = vperm.xlu0 %1185, %v1178
      %v1187 = vpop.permute.xlu0 %1186
      %v1189 = vadd.f32 %v1173, %v1182
      %v1190 = vadd.f32 %v1174, %v1182
      %v1191 = vadd.f32 %v1175, %v1187
      %v1192 = vadd.f32 %v1176, %v1187
      %v1193 = vld [vmem:[%s406] sm:$0xff]
      %v1194 = vld [vmem:[%s7] sm:$0xf]
      %1196 = vset.pattern.permute.xlu0 0
      %1197 = vperm.xlu0 %1196, %v1194
      %v1198 = vpop.permute.xlu0 %1197
      %v1200 = vunpack.c.l.s4 839922192
      %v1201 = vunpack.c.0.s8 %v1200
      %v1202 = vperm.slane %v1198, %v1201
      %v1204 = vsub.f32 %v1193, %v1202
      %v1205 = vld [vmem:[%s8] sm:$0xf]
      %1207 = vset.pattern.permute.xlu0 0
      %1208 = vperm.xlu0 %1207, %v1205
      %v1209 = vpop.permute.xlu0 %1208
      %v1211 = vunpack.c.l.s4 839922192
      %v1212 = vunpack.c.0.s8 %v1211
      %v1213 = vperm.slane %v1209, %v1212
      %v1215 = vmul.f32 %v1204, %v1213
      %v1216 = vadd.f32 %v1189, 1.0
      %v1217 = vadd.f32 %v1190, 1.0
      %1219 = vst [vmem:[#allocation1] ss:$2 sm:$0xff] %v1215
      %v1220 = vld.sshfl [vmem:[#allocation1] sm:$0xff pattern:$0x75316420]
      %v1221 = vld.sshfl [vmem:[#allocation1 + $0x8] sm:$0xff pattern:$0x75316420]
      %v1224 = vmul.f32 %v1216, %v1220
      %v1225 = vmul.f32 %v1217, %v1221
      %v1226 = vadd.f32 %v1224, %v1191
      %v1227 = vadd.f32 %v1225, %v1192
      %v1230 = vrot.slane %v1227, 4
      %v1231 = vsel %vm422, %v1226, %v1230
      %vm1233 = vcmask 130052
      %vm1234 = vmor %vm1233, %vm422
      %1235 = vst.msk [vmem:[%s419] sm:$0xff] %vm1234, %v1231
      %p1236 = scmp.lt.s32.totalorder %s24, 1
      %s1237 = scalar_select %p1236, %s24, 1
      %p1238 = scmp.lt.s32.totalorder %s25, 1
      %s1239 = scalar_select %p1238, %s25, 1
      %s1240 = smul.addr %s1239, 2
      %s1241 = smul.addr %s1237, 4
      %s1242 = sadd.s32 %s1240, %s1241
      %s1243 = smul.addr %s1242, 4
      %s1244 = scalar_lea.vmem %s9, %s1243
      // Predicated region
      $region57: #{spade_forward.3} parent=55 // pred_check
        %p1245 = pneg %p260
      $region58: #{spade_forward.3} parent=55 // pred_check_branch
        %1247 = sbr.rel (%p1245) target = $region60
      $region59: #{spade_forward.3} parent=55 // pred_region
        _
      $region60: #{spade_forward.3} parent=55 // pred_fallthru
        _
    $region56: #{spade_forward.3} parent=5 // pred_fallthru
      _
    %p1248 = scmp.le.s32.totalorder 2, %s15
    // Predicated region
    $region61: #{spade_forward.3} parent=5 // pred_check
      %p1249 = pneg %p1248
    $region62: #{spade_forward.3} parent=5 // pred_check_branch
      %1251 = sbr.rel (%p1249) target = $region64
    $region63: #{spade_forward.3} parent=5 // pred_region
      %s1252 = ssub.s32 %s15, 2
      // Predicated region
      $region65: #{spade_forward.3} parent=63 // pred_check
        %p1253 = pneg %p266
      $region66: #{spade_forward.3} parent=63 // pred_check_branch
        %1255 = sbr.rel (%p1253) target = $region68
      $region67: #{spade_forward.3} parent=63 // pred_region
        %p1256 = scmp.lt.s32.totalorder %s26, 1
        %s1257 = scalar_select %p1256, %s26, 1
        %p1258 = scmp.lt.s32.totalorder %s27, 1
        %s1259 = scalar_select %p1258, %s27, 1
        %s1260 = smul.addr %s1259, 2
        %s1261 = smul.addr %s1257, 4
        %s1262 = sadd.s32 %s1260, %s1261
        %s1263 = smul.addr %s1262, 4
        %s1264 = scalar_lea.vmem %s9, %s1263
      $region68: #{spade_forward.3} parent=63 // pred_fallthru
        _
    $region64: #{spade_forward.3} parent=5 // pred_fallthru
      _
  $region6: #{spade_forward.3} parent=0 // loop_footer
    %s19 = sadd.s32 1, %s15
  $region7: #{spade_forward.3} parent=0 // loop_footer_branch
    %14 = sbr.rel target = $region3
  $region8: #{spade_forward.3} parent=0 // loop_exit
    _

</llo_original>
